<compile_context>
chip_gen: v5e
topology: v5e:2x2
jax: 0.10.0
libtpu: 0.0.40
codegen_flags: <defaults>
</compile_context>

<pallas_src>
import functools
import math

import jax
import jax.numpy as jnp
from jax.experimental import pallas as pl
from jax.experimental.pallas import tpu as pltpu


def encoder_layer_kernel(num_head, dk, bb, mm_dtype,
                         x_ref, lens_ref,
                         wqkv_ref, bqkv_ref, wo_ref, bo_ref,
                         w1_ref, b1_ref, w2_ref, b2_ref, g_ref, beta_ref,
                         out_ref):
    S = x_ref.shape[1]
    D = num_head * dk

    x = x_ref[...].reshape(bb * S, D)                       # (bb*S, D) f32 rows

    # ---- fused QKV projection (weights already mm_dtype, 1/sqrt(dk) folded into wq/bq) ----
    qkv = jnp.dot(x.astype(mm_dtype), wqkv_ref[...],
                  preferred_element_type=jnp.float32) + bqkv_ref[...]   # (bb*S, 3D) f32

    def split_heads(t):                                     # (bb*S, D) -> (bb*NH, S, dk)
        t = t.reshape(bb, S, num_head, dk)
        # TODO(synk): avoid materializing the head-major copy (pltpu.einshape / multi-batch
        # dot_general) once supported; kept as jnp.transpose for guaranteed lowering.
        t = jnp.transpose(t, (0, 2, 1, 3))
        return t.reshape(bb * num_head, S, dk)

    q = split_heads(qkv[:, :D])
    k = split_heads(qkv[:, D:2 * D])
    v = split_heads(qkv[:, 2 * D:])

    # ---- key-padding bias from per-batch valid lengths: one vectorized compare ----
    lens = lens_ref[...].reshape(bb, 1)                                 # (bb, 1) int32
    key_ids = jax.lax.broadcasted_iota(jnp.int32, (bb, S), 1)           # (bb, S)
    neg_bias = jnp.where(key_ids >= lens, jnp.float32(-1e9), jnp.float32(0.0))
    neg_bias = jnp.broadcast_to(neg_bias[:, None, None, :],
                                (bb, num_head, 1, S)).reshape(bb * num_head, 1, S)

    # ---- attention, batched over (batch*head): no per-head loop, no concat ----
    # TODO(synk): for long S add a KV-block grid axis ('arbitrary') with online softmax
    # instead of materializing the (bb*NH, S, S) score tensor.
    s = jnp.einsum("bqd,bkd->bqk", q.astype(mm_dtype), k.astype(mm_dtype),
                   preferred_element_type=jnp.float32) + neg_bias       # (bb*NH, S, S) f32
    s = s - jnp.max(s, axis=-1, keepdims=True)
    e = jnp.exp(s)
    p = e * pl.reciprocal(jnp.sum(e, axis=-1, keepdims=True), approx=True)  # EUP path
    ctx = jnp.einsum("bqk,bkd->bqd", p.astype(mm_dtype), v.astype(mm_dtype),
                     preferred_element_type=jnp.float32)                # (bb*NH, S, dk)
    ctx = jnp.transpose(ctx.reshape(bb, num_head, S, dk),
                        (0, 2, 1, 3)).reshape(bb * S, D)                # (bb*S, D)

    attn_out = jnp.dot(ctx.astype(mm_dtype), wo_ref[...],
                       preferred_element_type=jnp.float32) + bo_ref[...]

    gamma = g_ref[...]
    beta = beta_ref[...]

    def layer_norm(a):
        # one-pass stats (var = E[a^2] - mean^2); rsqrt -> EUP slot, not VALU divide
        m1 = jnp.mean(a, axis=-1, keepdims=True)
        m2 = jnp.mean(a * a, axis=-1, keepdims=True)
        var = m2 - m1 * m1
        return (a - m1) * jax.lax.rsqrt(var + 1e-5) * gamma + beta

    # y = x + dropout(norm(attn(x)))      (dropout == identity in eval mode)
    y = x + layer_norm(attn_out)

    # ---- position-wise FFN ----
    # TODO(synk): K-tile over H (fori_loop / emit_pipeline, 512-1024 chunks, w1/w2 in pl.ANY)
    # at production H so the (bb*S,H) hidden + FFN weights fit v7x's 64 MiB VMEM.
    h = jnp.maximum(jnp.dot(y.astype(mm_dtype), w1_ref[...],
                            preferred_element_type=jnp.float32) + b1_ref[...], 0.0)
    ffn = jnp.dot(h.astype(mm_dtype), w2_ref[...],
                  preferred_element_type=jnp.float32) + b2_ref[...]

    # z = y + dropout(norm(ffn(y)))
    z = y + layer_norm(ffn)
    out_ref[...] = z.reshape(bb, S, D).astype(out_ref.dtype)


def encoder_layer(x, lengths, params, num_head, *, batch_block=None,
                  mm_dtype=jnp.bfloat16):
    """x: (B,S,D) f32; lengths: (B,) int32 valid key lengths (key-padding mask);
    params: dict of (in,out)-layout linear weights + LayerNorm gamma/beta."""
    B, S, D = x.shape
    H = params["w1"].shape[1]
    dk = D // num_head
    # Default to >=2 grid steps (both v7x TCs + DMA/compute overlap); at production shapes
    # pick batch_block so bb*S >= 256 (>=128 on v5e) to keep the MXU M dimension full.
    bb = batch_block if batch_block is not None else max(1, B // 2)
    assert B % bb == 0

    # Fold 1/sqrt(dk) into wq/bq, fuse QKV weights, pre-cast MXU weight operands (wrapper-side).
    scale = jnp.float32(1.0 / math.sqrt(dk))
    wqkv = jnp.concatenate([params["wq"] * scale, params["wk"], params["wv"]],
                           axis=1).astype(mm_dtype)                     # (D, 3D)
    bqkv = jnp.concatenate([params["bq"] * scale, params["bk"], params["bv"]],
                           axis=1)                                      # (1, 3D) f32
    wo = params["wo"].astype(mm_dtype)
    w1 = params["w1"].astype(mm_dtype)
    w2 = params["w2"].astype(mm_dtype)
    lens3 = lengths.astype(jnp.int32).reshape(B, 1, 1)

    kernel = functools.partial(encoder_layer_kernel, num_head, dk, bb, mm_dtype)

    def rep(shape):       # grid-invariant block -> single-buffered (never re-fetched)
        n = len(shape)
        return pl.BlockSpec(shape, lambda i, _n=n: (0,) * _n,
                            pipeline_mode=pl.Buffered(1))

    in_specs = [
        pl.BlockSpec((bb, S, D), lambda i: (i, 0, 0)),                  # x
        pl.BlockSpec((bb, 1, 1), lambda i: (i, 0, 0)),                  # lengths
        rep((D, 3 * D)), rep((1, 3 * D)),                               # fused wqkv, bqkv
        rep((D, D)), rep((1, D)),                                       # wo, bo
        rep((D, H)), rep((1, H)),                                       # w1, b1
        rep((H, D)), rep((1, D)),                                       # w2, b2
        rep((1, D)), rep((1, D)),                                       # ln gamma, beta
    ]
    out_spec = pl.BlockSpec((bb, S, D), lambda i: (i, 0, 0))

    # Explicit VMEM budget: single-buffered weights + double-buffered x/out + in-kernel
    # intermediates (qkv, scores, hidden, residuals), 25% headroom, capped for v7x (64 MiB).
    wbytes = jnp.dtype(mm_dtype).itemsize * (D * 3 * D + D * D + 2 * D * H)
    bbytes = 4 * (3 * D + D + H + 3 * D)
    abytes = 4 * (4 * bb * S * D)                                       # x + out, double-buffered
    ibytes = 4 * (bb * S * (3 * D + H + 4 * D) + bb * num_head * S * S)
    vmem_limit = int(min(max(1.25 * (wbytes + bbytes + abytes + ibytes),
                             32 * 2 ** 20), 64 * 2 ** 20))

    return pl.pallas_call(
        kernel,
        out_shape=jax.ShapeDtypeStruct((B, S, D), jnp.float32),
        grid_spec=pltpu.PrefetchScalarGridSpec(
            num_scalar_prefetch=0,
            grid=(B // bb,),
            in_specs=in_specs,
            out_specs=out_spec),
        compiler_params=pltpu.CompilerParams(
            dimension_semantics=("parallel",),
            vmem_limit_bytes=vmem_limit),
    )(x, lens3, wqkv, bqkv, wo, params["bo"],
      w1, params["b1"], w2, params["b2"],
      params["ln_g"], params["ln_b"])


def encoder_layer_ref(x, mask_bool, params, num_head):
    """Pure-JAX f32 reference mirroring the PyTorch forward (dropout = identity)."""
    B, S, D = x.shape
    dk = D // num_head

    def lin(a, w, b):
        return a @ w + b[0]

    q = lin(x, params["wq"], params["bq"]).reshape(B, S, num_head, dk).transpose(0, 2, 1, 3)
    k = lin(x, params["wk"], params["bk"]).reshape(B, S, num_head, dk).transpose(0, 2, 1, 3)
    v = lin(x, params["wv"], params["bv"]).reshape(B, S, num_head, dk).transpose(0, 2, 1, 3)
    score = jnp.einsum("bhqd,bhkd->bhqk", q, k) / math.sqrt(dk)
    score = jnp.where(mask_bool, -1e9, score)
    attn = jax.nn.softmax(score, axis=-1)
    ctx = jnp.einsum("bhqk,bhkd->bhqd", attn, v).transpose(0, 2, 1, 3).reshape(B, S, D)
    attn_out = lin(ctx, params["wo"], params["bo"])

    def ln(a):
        mean = jnp.mean(a, axis=-1, keepdims=True)
        var = jnp.mean((a - mean) ** 2, axis=-1, keepdims=True)
        return (a - mean) / jnp.sqrt(var + 1e-5) * params["ln_g"][0] + params["ln_b"][0]

    y = x + ln(attn_out)
    h = jax.nn.relu(lin(y, params["w1"], params["b1"]))
    f = lin(h, params["w2"], params["b2"])
    return y + ln(f)


if __name__ == "__main__":
    B, S, D, HID, NH = 2, 8, 32, 64, 4

    key = jax.random.PRNGKey(0)
    ks = jax.random.split(key, 16)

    def init(k, shape, scale=0.1):
        return (scale * jax.random.normal(k, shape)).astype(jnp.float32)

    params = {
        "wq": init(ks[0], (D, D)), "bq": init(ks[1], (1, D)),
        "wk": init(ks[2], (D, D)), "bk": init(ks[3], (1, D)),
        "wv": init(ks[4], (D, D)), "bv": init(ks[5], (1, D)),
        "wo": init(ks[6], (D, D)), "bo": init(ks[7], (1, D)),
        "w1": init(ks[8], (D, HID)), "b1": init(ks[9], (1, HID)),
        "w2": init(ks[10], (HID, D)), "b2": init(ks[11], (1, D)),
        "ln_g": jnp.ones((1, D), jnp.float32),
        "ln_b": jnp.zeros((1, D), jnp.float32),
    }

    x = jax.random.normal(ks[12], (B, S, D), dtype=jnp.float32)

    # Padding-style mask: mask out trailing key positions per batch element.
    lengths = jnp.array([S, S - 3], dtype=jnp.int32)
    key_pad = jnp.arange(S)[None, :] >= lengths[:, None]              # (B, S) True = masked
    mask_bool = jnp.broadcast_to(key_pad[:, None, None, :], (B, 1, S, S))

    ref = encoder_layer_ref(x, mask_bool, params, NH)

    # Default bf16-MXU path (production configuration): loose tolerance vs f32 reference.
    out_bf16 = jax.block_until_ready(encoder_layer(x, lengths, params, NH))
    assert out_bf16.shape == (B, S, D)
    assert jnp.allclose(out_bf16, ref, atol=1e-1, rtol=1e-1), "bf16 path mismatch vs reference"

    # f32-MXU path for tight numerical parity (structural correctness check).
    out_f32 = jax.block_until_ready(
        encoder_layer(x, lengths, params, NH, mm_dtype=jnp.float32))
    assert jnp.allclose(out_f32, ref, atol=5e-3, rtol=5e-3), "f32 path mismatch vs reference"

    print("KERNEL_OK")
</pallas_src>

<mosaic_0001>
module attributes {stable_mosaic.version = 11 : i64} {
  func.func @encoder_layer_kernel(%arg0: i32, %arg1: memref<1x8x32xf32, #tpu.memory_space<vmem>>, %arg2: memref<1x1x1xi32, #tpu.memory_space<vmem>>, %arg3: memref<32x96xbf16, #tpu.memory_space<vmem>>, %arg4: memref<1x96xf32, #tpu.memory_space<vmem>>, %arg5: memref<32x32xbf16, #tpu.memory_space<vmem>>, %arg6: memref<1x32xf32, #tpu.memory_space<vmem>>, %arg7: memref<32x64xbf16, #tpu.memory_space<vmem>>, %arg8: memref<1x64xf32, #tpu.memory_space<vmem>>, %arg9: memref<64x32xbf16, #tpu.memory_space<vmem>>, %arg10: memref<1x32xf32, #tpu.memory_space<vmem>>, %arg11: memref<1x32xf32, #tpu.memory_space<vmem>>, %arg12: memref<1x32xf32, #tpu.memory_space<vmem>>, %arg13: memref<1x8x32xf32, #tpu.memory_space<vmem>>) attributes {dimension_semantics = [#tpu.dimension_semantics<parallel>], iteration_bounds = array<i64: 2>, scalar_prefetch = 0 : i64, scratch_operands = 0 : i64, tpu.core_type = #tpu.core_type<tc>, window_params = [{transform_indices = @transform_0, window_bounds = array<i64: 1, 8, 32>}, {transform_indices = @transform_1, window_bounds = array<i64: 1, 1, 1>}, {pipeline_mode = #tpu.pipeline_mode<synchronous>, transform_indices = @transform_2, window_bounds = array<i64: 32, 96>}, {pipeline_mode = #tpu.pipeline_mode<synchronous>, transform_indices = @transform_3, window_bounds = array<i64: 1, 96>}, {pipeline_mode = #tpu.pipeline_mode<synchronous>, transform_indices = @transform_4, window_bounds = array<i64: 32, 32>}, {pipeline_mode = #tpu.pipeline_mode<synchronous>, transform_indices = @transform_5, window_bounds = array<i64: 1, 32>}, {pipeline_mode = #tpu.pipeline_mode<synchronous>, transform_indices = @transform_6, window_bounds = array<i64: 32, 64>}, {pipeline_mode = #tpu.pipeline_mode<synchronous>, transform_indices = @transform_7, window_bounds = array<i64: 1, 64>}, {pipeline_mode = #tpu.pipeline_mode<synchronous>, transform_indices = @transform_8, window_bounds = array<i64: 64, 32>}, {pipeline_mode = #tpu.pipeline_mode<synchronous>, transform_indices = @transform_9, window_bounds = array<i64: 1, 32>}, {pipeline_mode = #tpu.pipeline_mode<synchronous>, transform_indices = @transform_10, window_bounds = array<i64: 1, 32>}, {pipeline_mode = #tpu.pipeline_mode<synchronous>, transform_indices = @transform_11, window_bounds = array<i64: 1, 32>}, {transform_indices = @transform_12, window_bounds = array<i64: 1, 8, 32>}]} {
    %c0 = arith.constant 0 : index
    %c0_0 = arith.constant 0 : index
    %c0_1 = arith.constant 0 : index
    %0 = vector.load %arg1[%c0, %c0_0, %c0_1] : memref<1x8x32xf32, #tpu.memory_space<vmem>>, vector<1x8x32xf32>
    %1 = vector.shape_cast %0 : vector<1x8x32xf32> to vector<8x32xf32>
    %2 = arith.truncf %1 : vector<8x32xf32> to vector<8x32xbf16>
    %c0_2 = arith.constant 0 : index
    %c0_3 = arith.constant 0 : index
    %3 = vector.load %arg3[%c0_2, %c0_3] : memref<32x96xbf16, #tpu.memory_space<vmem>>, vector<32x96xbf16>
    %cst = arith.constant dense<0.000000e+00> : vector<8x96xf32>
    %4 = tpu.matmul %2, %3, %cst {dimension_numbers = #tpu.dot_dimension_numbers<[1], [0], [0], [1], [0, 0, 1, 1], [], []>} : vector<8x32xbf16>, vector<32x96xbf16>, vector<8x96xf32> -> vector<8x96xf32>
    %c0_4 = arith.constant 0 : index
    %c0_5 = arith.constant 0 : index
    %5 = vector.load %arg4[%c0_4, %c0_5] : memref<1x96xf32, #tpu.memory_space<vmem>>, vector<1x96xf32>
    %6 = vector.broadcast %5 : vector<1x96xf32> to vector<8x96xf32>
    %7 = arith.addf %4, %6 : vector<8x96xf32>
    %8 = vector.extract_strided_slice %7 {offsets = [0, 0], sizes = [8, 32], strides = [1, 1]} : vector<8x96xf32> to vector<8x32xf32>
    %9 = vector.shape_cast %8 : vector<8x32xf32> to vector<1x8x4x8xf32>
    %10 = tpu.transpose %9, [0, 2, 1, 3] : vector<1x8x4x8xf32> -> vector<1x4x8x8xf32>
    %11 = vector.shape_cast %10 : vector<1x4x8x8xf32> to vector<4x8x8xf32>
    %12 = vector.extract_strided_slice %7 {offsets = [0, 32], sizes = [8, 32], strides = [1, 1]} : vector<8x96xf32> to vector<8x32xf32>
    %13 = vector.shape_cast %12 : vector<8x32xf32> to vector<1x8x4x8xf32>
    %14 = tpu.transpose %13, [0, 2, 1, 3] : vector<1x8x4x8xf32> -> vector<1x4x8x8xf32>
    %15 = vector.shape_cast %14 : vector<1x4x8x8xf32> to vector<4x8x8xf32>
    %16 = vector.extract_strided_slice %7 {offsets = [0, 64], sizes = [8, 32], strides = [1, 1]} : vector<8x96xf32> to vector<8x32xf32>
    %17 = vector.shape_cast %16 : vector<8x32xf32> to vector<1x8x4x8xf32>
    %18 = tpu.transpose %17, [0, 2, 1, 3] : vector<1x8x4x8xf32> -> vector<1x4x8x8xf32>
    %19 = vector.shape_cast %18 : vector<1x4x8x8xf32> to vector<4x8x8xf32>
    %c0_6 = arith.constant 0 : index
    %c0_7 = arith.constant 0 : index
    %c0_8 = arith.constant 0 : index
    %20 = vector.load %arg2[%c0_6, %c0_7, %c0_8] : memref<1x1x1xi32, #tpu.memory_space<vmem>>, vector<1x1x1xi32>
    %21 = vector.shape_cast %20 : vector<1x1x1xi32> to vector<1x1xi32>
    %22 = tpu.iota {dimensions = array<i32: 1>} : vector<1x8xi32>
    %23 = vector.broadcast %21 : vector<1x1xi32> to vector<1x8xi32>
    %24 = arith.cmpi sge, %22, %23 : vector<1x8xi32>
    %cst_9 = arith.constant -1.000000e+09 : f32
    %cst_10 = arith.constant 0.000000e+00 : f32
    %25 = vector.broadcast %cst_9 : f32 to vector<1x8xf32>
    %26 = vector.broadcast %cst_10 : f32 to vector<1x8xf32>
    %27 = arith.select %24, %25, %26 : vector<1x8xi1>, vector<1x8xf32>
    %28 = vector.shape_cast %27 : vector<1x8xf32> to vector<1x1x1x8xf32>
    %29 = vector.shape_cast %28 : vector<1x1x1x8xf32> to vector<1x1x1x8xf32>
    %30 = vector.broadcast %29 : vector<1x1x1x8xf32> to vector<1x4x1x8xf32>
    %31 = vector.shape_cast %30 : vector<1x4x1x8xf32> to vector<4x1x8xf32>
    %32 = arith.truncf %11 : vector<4x8x8xf32> to vector<4x8x8xbf16>
    %33 = arith.truncf %15 : vector<4x8x8xf32> to vector<4x8x8xbf16>
    "tpu.trace_start"() <{level = 10 : i32, message = "bqd,bkd->bqk"}> : () -> ()
    %cst_11 = arith.constant dense<0.000000e+00> : vector<4x8x8xf32>
    %34 = tpu.matmul %32, %33, %cst_11 {dimension_numbers = #tpu.dot_dimension_numbers<[2], [2], [1], [1], [0, 0, 0, 1, 1, 1], [0], [0]>} : vector<4x8x8xbf16>, vector<4x8x8xbf16>, vector<4x8x8xf32> -> vector<4x8x8xf32>
    "tpu.trace_stop"() : () -> ()
    %35 = vector.broadcast %31 : vector<4x1x8xf32> to vector<4x8x8xf32>
    %36 = arith.addf %34, %35 : vector<4x8x8xf32>
    %cst_12 = arith.constant dense<0xFF800000> : vector<4x8xf32>
    %37 = vector.multi_reduction <maximumf>, %36, %cst_12 [2] : vector<4x8x8xf32> to vector<4x8xf32>
    %38 = vector.shape_cast %37 : vector<4x8xf32> to vector<4x8x1xf32>
    %39 = vector.broadcast %38 : vector<4x8x1xf32> to vector<4x8x8xf32>
    %40 = arith.subf %36, %39 : vector<4x8x8xf32>
    %41 = math.exp %40 : vector<4x8x8xf32>
    %cst_13 = arith.constant dense<0.000000e+00> : vector<4x8xf32>
    %42 = vector.multi_reduction <add>, %41, %cst_13 [2] : vector<4x8x8xf32> to vector<4x8xf32>
    %43 = vector.shape_cast %42 : vector<4x8xf32> to vector<4x8x1xf32>
    %44 = tpu.reciprocal %43 {approx = true} : vector<4x8x1xf32> -> vector<4x8x1xf32>
    %45 = vector.broadcast %44 : vector<4x8x1xf32> to vector<4x8x8xf32>
    %46 = arith.mulf %41, %45 : vector<4x8x8xf32>
    %47 = arith.truncf %46 : vector<4x8x8xf32> to vector<4x8x8xbf16>
    %48 = arith.truncf %19 : vector<4x8x8xf32> to vector<4x8x8xbf16>
    "tpu.trace_start"() <{level = 10 : i32, message = "bqk,bkd->bqd"}> : () -> ()
    %cst_14 = arith.constant dense<0.000000e+00> : vector<4x8x8xf32>
    %49 = tpu.matmul %47, %48, %cst_14 {dimension_numbers = #tpu.dot_dimension_numbers<[2], [1], [1], [2], [0, 0, 0, 1, 1, 2], [0], [0]>} : vector<4x8x8xbf16>, vector<4x8x8xbf16>, vector<4x8x8xf32> -> vector<4x8x8xf32>
    "tpu.trace_stop"() : () -> ()
    %50 = vector.shape_cast %49 : vector<4x8x8xf32> to vector<1x4x8x8xf32>
    %51 = tpu.transpose %50, [0, 2, 1, 3] : vector<1x4x8x8xf32> -> vector<1x8x4x8xf32>
    %52 = vector.shape_cast %51 : vector<1x8x4x8xf32> to vector<8x32xf32>
    %53 = arith.truncf %52 : vector<8x32xf32> to vector<8x32xbf16>
    %c0_15 = arith.constant 0 : index
    %c0_16 = arith.constant 0 : index
    %54 = vector.load %arg5[%c0_15, %c0_16] : memref<32x32xbf16, #tpu.memory_space<vmem>>, vector<32x32xbf16>
    %cst_17 = arith.constant dense<0.000000e+00> : vector<8x32xf32>
    %55 = tpu.matmul %53, %54, %cst_17 {dimension_numbers = #tpu.dot_dimension_numbers<[1], [0], [0], [1], [0, 0, 1, 1], [], []>} : vector<8x32xbf16>, vector<32x32xbf16>, vector<8x32xf32> -> vector<8x32xf32>
    %c0_18 = arith.constant 0 : index
    %c0_19 = arith.constant 0 : index
    %56 = vector.load %arg6[%c0_18, %c0_19] : memref<1x32xf32, #tpu.memory_space<vmem>>, vector<1x32xf32>
    %57 = vector.broadcast %56 : vector<1x32xf32> to vector<8x32xf32>
    %58 = arith.addf %55, %57 : vector<8x32xf32>
    %c0_20 = arith.constant 0 : index
    %c0_21 = arith.constant 0 : index
    %59 = vector.load %arg11[%c0_20, %c0_21] : memref<1x32xf32, #tpu.memory_space<vmem>>, vector<1x32xf32>
    %c0_22 = arith.constant 0 : index
    %c0_23 = arith.constant 0 : index
    %60 = vector.load %arg12[%c0_22, %c0_23] : memref<1x32xf32, #tpu.memory_space<vmem>>, vector<1x32xf32>
    %cst_24 = arith.constant dense<0.000000e+00> : vector<8xf32>
    %61 = vector.multi_reduction <add>, %58, %cst_24 [1] : vector<8x32xf32> to vector<8xf32>
    %62 = vector.shape_cast %61 : vector<8xf32> to vector<8x1xf32>
    %cst_25 = arith.constant 3.200000e+01 : f32
    %63 = vector.broadcast %cst_25 : f32 to vector<8x1xf32>
    %64 = arith.divf %62, %63 : vector<8x1xf32>
    %65 = arith.mulf %58, %58 : vector<8x32xf32>
    %cst_26 = arith.constant dense<0.000000e+00> : vector<8xf32>
    %66 = vector.multi_reduction <add>, %65, %cst_26 [1] : vector<8x32xf32> to vector<8xf32>
    %67 = vector.shape_cast %66 : vector<8xf32> to vector<8x1xf32>
    %cst_27 = arith.constant 3.200000e+01 : f32
    %68 = vector.broadcast %cst_27 : f32 to vector<8x1xf32>
    %69 = arith.divf %67, %68 : vector<8x1xf32>
    %70 = arith.mulf %64, %64 : vector<8x1xf32>
    %71 = arith.subf %69, %70 : vector<8x1xf32>
    %72 = vector.broadcast %64 : vector<8x1xf32> to vector<8x32xf32>
    %73 = arith.subf %58, %72 : vector<8x32xf32>
    %cst_28 = arith.constant 9.99999974E-6 : f32
    %74 = vector.broadcast %cst_28 : f32 to vector<8x1xf32>
    %75 = arith.addf %71, %74 : vector<8x1xf32>
    %76 = math.rsqrt %75 : vector<8x1xf32>
    %77 = vector.broadcast %76 : vector<8x1xf32> to vector<8x32xf32>
    %78 = arith.mulf %73, %77 : vector<8x32xf32>
    %79 = vector.broadcast %59 : vector<1x32xf32> to vector<8x32xf32>
    %80 = arith.mulf %78, %79 : vector<8x32xf32>
    %81 = vector.broadcast %60 : vector<1x32xf32> to vector<8x32xf32>
    %82 = arith.addf %80, %81 : vector<8x32xf32>
    %83 = arith.addf %1, %82 : vector<8x32xf32>
    %84 = arith.truncf %83 : vector<8x32xf32> to vector<8x32xbf16>
    %c0_29 = arith.constant 0 : index
    %c0_30 = arith.constant 0 : index
    %85 = vector.load %arg7[%c0_29, %c0_30] : memref<32x64xbf16, #tpu.memory_space<vmem>>, vector<32x64xbf16>
    %cst_31 = arith.constant dense<0.000000e+00> : vector<8x64xf32>
    %86 = tpu.matmul %84, %85, %cst_31 {dimension_numbers = #tpu.dot_dimension_numbers<[1], [0], [0], [1], [0, 0, 1, 1], [], []>} : vector<8x32xbf16>, vector<32x64xbf16>, vector<8x64xf32> -> vector<8x64xf32>
    %c0_32 = arith.constant 0 : index
    %c0_33 = arith.constant 0 : index
    %87 = vector.load %arg8[%c0_32, %c0_33] : memref<1x64xf32, #tpu.memory_space<vmem>>, vector<1x64xf32>
    %88 = vector.broadcast %87 : vector<1x64xf32> to vector<8x64xf32>
    %89 = arith.addf %86, %88 : vector<8x64xf32>
    %cst_34 = arith.constant 0.000000e+00 : f32
    %90 = vector.broadcast %cst_34 : f32 to vector<8x64xf32>
    %91 = arith.maximumf %89, %90 : vector<8x64xf32>
    %92 = arith.truncf %91 : vector<8x64xf32> to vector<8x64xbf16>
    %c0_35 = arith.constant 0 : index
    %c0_36 = arith.constant 0 : index
    %93 = vector.load %arg9[%c0_35, %c0_36] : memref<64x32xbf16, #tpu.memory_space<vmem>>, vector<64x32xbf16>
    %cst_37 = arith.constant dense<0.000000e+00> : vector<8x32xf32>
    %94 = tpu.matmul %92, %93, %cst_37 {dimension_numbers = #tpu.dot_dimension_numbers<[1], [0], [0], [1], [0, 0, 1, 1], [], []>} : vector<8x64xbf16>, vector<64x32xbf16>, vector<8x32xf32> -> vector<8x32xf32>
    %c0_38 = arith.constant 0 : index
    %c0_39 = arith.constant 0 : index
    %95 = vector.load %arg10[%c0_38, %c0_39] : memref<1x32xf32, #tpu.memory_space<vmem>>, vector<1x32xf32>
    %96 = vector.broadcast %95 : vector<1x32xf32> to vector<8x32xf32>
    %97 = arith.addf %94, %96 : vector<8x32xf32>
    %cst_40 = arith.constant dense<0.000000e+00> : vector<8xf32>
    %98 = vector.multi_reduction <add>, %97, %cst_40 [1] : vector<8x32xf32> to vector<8xf32>
    %99 = vector.shape_cast %98 : vector<8xf32> to vector<8x1xf32>
    %cst_41 = arith.constant 3.200000e+01 : f32
    %100 = vector.broadcast %cst_41 : f32 to vector<8x1xf32>
    %101 = arith.divf %99, %100 : vector<8x1xf32>
    %102 = arith.mulf %97, %97 : vector<8x32xf32>
    %cst_42 = arith.constant dense<0.000000e+00> : vector<8xf32>
    %103 = vector.multi_reduction <add>, %102, %cst_42 [1] : vector<8x32xf32> to vector<8xf32>
    %104 = vector.shape_cast %103 : vector<8xf32> to vector<8x1xf32>
    %cst_43 = arith.constant 3.200000e+01 : f32
    %105 = vector.broadcast %cst_43 : f32 to vector<8x1xf32>
    %106 = arith.divf %104, %105 : vector<8x1xf32>
    %107 = arith.mulf %101, %101 : vector<8x1xf32>
    %108 = arith.subf %106, %107 : vector<8x1xf32>
    %109 = vector.broadcast %101 : vector<8x1xf32> to vector<8x32xf32>
    %110 = arith.subf %97, %109 : vector<8x32xf32>
    %cst_44 = arith.constant 9.99999974E-6 : f32
    %111 = vector.broadcast %cst_44 : f32 to vector<8x1xf32>
    %112 = arith.addf %108, %111 : vector<8x1xf32>
    %113 = math.rsqrt %112 : vector<8x1xf32>
    %114 = vector.broadcast %113 : vector<8x1xf32> to vector<8x32xf32>
    %115 = arith.mulf %110, %114 : vector<8x32xf32>
    %116 = vector.broadcast %59 : vector<1x32xf32> to vector<8x32xf32>
    %117 = arith.mulf %115, %116 : vector<8x32xf32>
    %118 = vector.broadcast %60 : vector<1x32xf32> to vector<8x32xf32>
    %119 = arith.addf %117, %118 : vector<8x32xf32>
    %120 = arith.addf %83, %119 : vector<8x32xf32>
    %121 = vector.shape_cast %120 : vector<8x32xf32> to vector<1x8x32xf32>
    %c0_45 = arith.constant 0 : index
    %c0_46 = arith.constant 0 : index
    %c0_47 = arith.constant 0 : index
    %122 = vector.load %arg13[%c0_45, %c0_46, %c0_47] : memref<1x8x32xf32, #tpu.memory_space<vmem>>, vector<1x8x32xf32>
    tpu.vector_store %arg13[%c0_45, %c0_46, %c0_47], %121 {strides = array<i32>} : memref<1x8x32xf32, #tpu.memory_space<vmem>>, vector<1x8x32xf32>,
    return
  }
  func.func @transform_0(%arg0: i32) -> (i32, i32, i32) {
    %c0_i32 = arith.constant 0 : i32
    %c0_i32_0 = arith.constant 0 : i32
    %c0_i32_1 = arith.constant 0 : i32
    return %arg0, %c0_i32, %c0_i32_0 : i32, i32, i32
  }
  func.func @transform_1(%arg0: i32) -> (i32, i32, i32) {
    %c0_i32 = arith.constant 0 : i32
    %c0_i32_0 = arith.constant 0 : i32
    %c0_i32_1 = arith.constant 0 : i32
    return %arg0, %c0_i32, %c0_i32_0 : i32, i32, i32
  }
  func.func @transform_2(%arg0: i32) -> (i32, i32) {
    %c0_i32 = arith.constant 0 : i32
    %c0_i32_0 = arith.constant 0 : i32
    %c0_i32_1 = arith.constant 0 : i32
    return %c0_i32, %c0_i32_0 : i32, i32
  }
  func.func @transform_3(%arg0: i32) -> (i32, i32) {
    %c0_i32 = arith.constant 0 : i32
    %c0_i32_0 = arith.constant 0 : i32
    %c0_i32_1 = arith.constant 0 : i32
    return %c0_i32, %c0_i32_0 : i32, i32
  }
  func.func @transform_4(%arg0: i32) -> (i32, i32) {
    %c0_i32 = arith.constant 0 : i32
    %c0_i32_0 = arith.constant 0 : i32
    %c0_i32_1 = arith.constant 0 : i32
    return %c0_i32, %c0_i32_0 : i32, i32
  }
  func.func @transform_5(%arg0: i32) -> (i32, i32) {
    %c0_i32 = arith.constant 0 : i32
    %c0_i32_0 = arith.constant 0 : i32
    %c0_i32_1 = arith.constant 0 : i32
    return %c0_i32, %c0_i32_0 : i32, i32
  }
  func.func @transform_6(%arg0: i32) -> (i32, i32) {
    %c0_i32 = arith.constant 0 : i32
    %c0_i32_0 = arith.constant 0 : i32
    %c0_i32_1 = arith.constant 0 : i32
    return %c0_i32, %c0_i32_0 : i32, i32
  }
  func.func @transform_7(%arg0: i32) -> (i32, i32) {
    %c0_i32 = arith.constant 0 : i32
    %c0_i32_0 = arith.constant 0 : i32
    %c0_i32_1 = arith.constant 0 : i32
    return %c0_i32, %c0_i32_0 : i32, i32
  }
  func.func @transform_8(%arg0: i32) -> (i32, i32) {
    %c0_i32 = arith.constant 0 : i32
    %c0_i32_0 = arith.constant 0 : i32
    %c0_i32_1 = arith.constant 0 : i32
    return %c0_i32, %c0_i32_0 : i32, i32
  }
  func.func @transform_9(%arg0: i32) -> (i32, i32) {
    %c0_i32 = arith.constant 0 : i32
    %c0_i32_0 = arith.constant 0 : i32
    %c0_i32_1 = arith.constant 0 : i32
    return %c0_i32, %c0_i32_0 : i32, i32
  }
  func.func @transform_10(%arg0: i32) -> (i32, i32) {
    %c0_i32 = arith.constant 0 : i32
    %c0_i32_0 = arith.constant 0 : i32
    %c0_i32_1 = arith.constant 0 : i32
    return %c0_i32, %c0_i32_0 : i32, i32
  }
  func.func @transform_11(%arg0: i32) -> (i32, i32) {
    %c0_i32 = arith.constant 0 : i32
    %c0_i32_0 = arith.constant 0 : i32
    %c0_i32_1 = arith.constant 0 : i32
    return %c0_i32, %c0_i32_0 : i32, i32
  }
  func.func @transform_12(%arg0: i32) -> (i32, i32, i32) {
    %c0_i32 = arith.constant 0 : i32
    %c0_i32_0 = arith.constant 0 : i32
    %c0_i32_1 = arith.constant 0 : i32
    return %arg0, %c0_i32, %c0_i32_0 : i32, i32, i32
  }
}

</mosaic_0001>

<llo_original>
// kernel: tpu_custom_call.1
$region0: #{tpu_custom_call.1}
  #allocation0 [shape = 'u32[]', space=smem, size = 0x4, offset = 0x4, fixed_abs, tag = 'smem constant byte address 0x4 - core index']
  #allocation1 [shape = 'u32[72,128]{1,0:T(1,128)}', space=vmem, size = 0x9000, scoped, tag = 'internal scratch']
  %s0 = inlined_call_operand.vmem [shape: f32[2,8,32], index: 0, kind: input, shape index: {}]
  %s1 = inlined_call_operand.vmem [shape: s32[2,1,1], index: 1, kind: input, shape index: {}]
  %s2 = inlined_call_operand.vmem [shape: bf16[32,96], index: 2, kind: input, shape index: {}]
  %s3 = inlined_call_operand.vmem [shape: f32[1,96], index: 3, kind: input, shape index: {}]
  %s4 = inlined_call_operand.vmem [shape: bf16[32,32], index: 4, kind: input, shape index: {}]
  %s5 = inlined_call_operand.vmem [shape: f32[1,32], index: 5, kind: input, shape index: {}]
  %s6 = inlined_call_operand.hbm [shape: bf16[32,64], index: 6, kind: input, shape index: {}]
  %s7 = inlined_call_operand.vmem [shape: f32[1,64], index: 7, kind: input, shape index: {}]
  %s8 = inlined_call_operand.vmem [shape: bf16[64,32], index: 8, kind: input, shape index: {}]
  %s9 = inlined_call_operand.vmem [shape: f32[1,32], index: 9, kind: input, shape index: {}]
  %s10 = inlined_call_operand.vmem [shape: f32[1,32], index: 10, kind: input, shape index: {}]
  %s11 = inlined_call_operand.vmem [shape: f32[1,32], index: 11, kind: input, shape index: {}]
  %s12 = inlined_call_operand.hbm [shape: f32[2,8,32], index: 12, kind: output, shape index: {}]
  %s13 = sld [smem:[#allocation0]]
  $region85: #{tpu_custom_call.1} parent=0
    _
  %s15 = ssub.s32 1, %s13
  %s16 = scalar_select 0, %s15, %s13
  $region1: #{tpu_custom_call.1} parent=0
    #allocation2 [shape = 'u8[8192]{0}', space=vmem, size = 0x2000, scoped, tag = 'input window, operand 6, single buffered']
    #allocation3 [shape = 's32[2]{0}', space=sflag, size = 0x8, scoped, tag = 'scoped memory for tpu_custom_call.1']
    #allocation4 [shape = 's32[2]{0}', space=sflag, size = 0x8, scoped, tag = 'scoped memory for tpu_custom_call.1']
    #allocation5 [shape = 'u8[8192]{0}', space=vmem, size = 0x2000, scoped, tag = 'output window, operand 0']
    %17 = vsyncpa [#allocation3], 0
    %18 = vsyncpa [#allocation4], 0
    %s19 = scalar_lea.sflag [#allocation4], 1
    %20 = vsyncpa %s19, 0
    loop: start=0, step=1, limit=4
    $region2: #{tpu_custom_call.1} parent=1 // loop_pre_header
      _
    $region3: #{tpu_custom_call.1} parent=1 // loop_header
      %s22 = sphi 0, %s26
      %p23 = scmp.ge.s32.totalorder %s22, 4
      %s32 = sphi 0, %s34
      %s35 = sphi 0, %s32
      %s36 = sphi 0, %s35
      %s52 = sphi 0, %s36
      %s58 = sphi 0, %s60
      %s61 = sphi 0, %s58
      %s62 = sphi 0, %s61
      %s78 = sphi 0, %s62
      %s82 = sphi 0, %s82
      %s84 = sphi 0, %s82
      %s85 = sphi 0, %s84
      %s99 = sphi 0, %s85
      %s103 = sphi 0, %s103
      %s105 = sphi 0, %s103
      %s106 = sphi 0, %s105
      %s120 = sphi 0, %s106
      %s124 = sphi 0, %s124
      %s126 = sphi 0, %s124
      %s127 = sphi 0, %s126
      %s141 = sphi 0, %s127
      %s145 = sphi 0, %s145
      %s147 = sphi 0, %s145
      %s148 = sphi 0, %s147
      %s162 = sphi 0, %s148
      %s166 = sphi 0, %s166
      %s168 = sphi 0, %s166
      %s169 = sphi 0, %s168
      %s183 = sphi 0, %s169
      %s187 = sphi 0, %s187
      %s189 = sphi 0, %s187
      %s190 = sphi 0, %s189
      %s204 = sphi 0, %s190
      %s208 = sphi 0, %s208
      %s210 = sphi 0, %s208
      %s211 = sphi 0, %s210
      %s225 = sphi 0, %s211
      %s229 = sphi 0, %s229
      %s231 = sphi 0, %s229
      %s232 = sphi 0, %s231
      %s246 = sphi 0, %s232
      %s250 = sphi 0, %s250
      %s252 = sphi 0, %s250
      %s253 = sphi 0, %s252
      %s267 = sphi 0, %s253
      %s271 = sphi 0, %s271
      %s273 = sphi 0, %s271
      %s274 = sphi 0, %s273
      %s288 = sphi 0, %s274
      %s294 = sphi 0, %s296
      %s297 = sphi 0, %s294
      %s298 = sphi 0, %s297
      %s314 = sphi 0, %s298
    $region4: #{tpu_custom_call.1} parent=1 // loop_header_branch
      %25 = sbr.rel (%p23) target = $region8
    $region5: #{tpu_custom_call.1} parent=1 // loop_body
      %s27 = ssub.s32 %s22, 1
      %s28 = ssub.s32 %s22, 2
      %s29 = sadd.s32 %s22, 1
      %s30 = ssub.s32 %s22, %s29
      %p31 = scmp.eq.s32.totalorder %s30, 0
      %s33 = sadd.s32 %s32, 1
      %s34 = scalar_select %p31, %s32, %s33
      %p37 = pneg %p31
      %p38 = scmp.eq.s32.totalorder %s22, 1
      %p39 = por %p37, %p38
      %p40 = scmp.ne.s32.totalorder %s32, %s35
      %p41 = scmp.eq.s32.totalorder %s22, 0
      %p42 = por %p40, %p41
      %p43 = scmp.ne.s32.totalorder %s32, %s35
      %p44 = scmp.eq.s32.totalorder %s27, 1
      %p45 = por %p43, %p44
      %p46 = scmp.ne.s32.totalorder %s35, %s36
      %p47 = scmp.eq.s32.totalorder %s27, 0
      %p48 = por %p46, %p47
      %p49 = scmp.ne.s32.totalorder %s35, %s36
      %p50 = scmp.eq.s32.totalorder %s28, 1
      %p51 = por %p49, %p50
      %p53 = scmp.ne.s32.totalorder %s36, %s52
      %p54 = scmp.eq.s32.totalorder %s28, 0
      %p55 = por %p53, %p54
      %s56 = ssub.s32 %s22, %s29
      %p57 = scmp.eq.s32.totalorder %s56, 0
      %s59 = sadd.s32 %s58, 1
      %s60 = scalar_select %p57, %s58, %s59
      %p63 = pneg %p57
      %p64 = scmp.eq.s32.totalorder %s22, 1
      %p65 = por %p63, %p64
      %p66 = scmp.ne.s32.totalorder %s58, %s61
      %p67 = scmp.eq.s32.totalorder %s22, 0
      %p68 = por %p66, %p67
      %p69 = scmp.ne.s32.totalorder %s58, %s61
      %p70 = scmp.eq.s32.totalorder %s27, 1
      %p71 = por %p69, %p70
      %p72 = scmp.ne.s32.totalorder %s61, %s62
      %p73 = scmp.eq.s32.totalorder %s27, 0
      %p74 = por %p72, %p73
      %p75 = scmp.ne.s32.totalorder %s61, %s62
      %p76 = scmp.eq.s32.totalorder %s28, 1
      %p77 = por %p75, %p76
      %p79 = scmp.ne.s32.totalorder %s62, %s78
      %p80 = scmp.eq.s32.totalorder %s28, 0
      %p81 = por %p79, %p80
      %s83 = sadd.s32 %s82, 1
      %p86 = scmp.eq.s32.totalorder %s22, 1
      %p87 = scmp.ne.s32.totalorder %s82, %s84
      %p88 = scmp.eq.s32.totalorder %s22, 0
      %p89 = por %p87, %p88
      %p90 = scmp.ne.s32.totalorder %s82, %s84
      %p91 = scmp.eq.s32.totalorder %s27, 1
      %p92 = por %p90, %p91
      %p93 = scmp.ne.s32.totalorder %s84, %s85
      %p94 = scmp.eq.s32.totalorder %s27, 0
      %p95 = por %p93, %p94
      %p96 = scmp.ne.s32.totalorder %s84, %s85
      %p97 = scmp.eq.s32.totalorder %s28, 1
      %p98 = por %p96, %p97
      %p100 = scmp.ne.s32.totalorder %s85, %s99
      %p101 = scmp.eq.s32.totalorder %s28, 0
      %p102 = por %p100, %p101
      %s104 = sadd.s32 %s103, 1
      %p107 = scmp.eq.s32.totalorder %s22, 1
      %p108 = scmp.ne.s32.totalorder %s103, %s105
      %p109 = scmp.eq.s32.totalorder %s22, 0
      %p110 = por %p108, %p109
      %p111 = scmp.ne.s32.totalorder %s103, %s105
      %p112 = scmp.eq.s32.totalorder %s27, 1
      %p113 = por %p111, %p112
      %p114 = scmp.ne.s32.totalorder %s105, %s106
      %p115 = scmp.eq.s32.totalorder %s27, 0
      %p116 = por %p114, %p115
      %p117 = scmp.ne.s32.totalorder %s105, %s106
      %p118 = scmp.eq.s32.totalorder %s28, 1
      %p119 = por %p117, %p118
      %p121 = scmp.ne.s32.totalorder %s106, %s120
      %p122 = scmp.eq.s32.totalorder %s28, 0
      %p123 = por %p121, %p122
      %s125 = sadd.s32 %s124, 1
      %p128 = scmp.eq.s32.totalorder %s22, 1
      %p129 = scmp.ne.s32.totalorder %s124, %s126
      %p130 = scmp.eq.s32.totalorder %s22, 0
      %p131 = por %p129, %p130
      %p132 = scmp.ne.s32.totalorder %s124, %s126
      %p133 = scmp.eq.s32.totalorder %s27, 1
      %p134 = por %p132, %p133
      %p135 = scmp.ne.s32.totalorder %s126, %s127
      %p136 = scmp.eq.s32.totalorder %s27, 0
      %p137 = por %p135, %p136
      %p138 = scmp.ne.s32.totalorder %s126, %s127
      %p139 = scmp.eq.s32.totalorder %s28, 1
      %p140 = por %p138, %p139
      %p142 = scmp.ne.s32.totalorder %s127, %s141
      %p143 = scmp.eq.s32.totalorder %s28, 0
      %p144 = por %p142, %p143
      %s146 = sadd.s32 %s145, 1
      %p149 = scmp.eq.s32.totalorder %s22, 1
      %p150 = scmp.ne.s32.totalorder %s145, %s147
      %p151 = scmp.eq.s32.totalorder %s22, 0
      %p152 = por %p150, %p151
      %p153 = scmp.ne.s32.totalorder %s145, %s147
      %p154 = scmp.eq.s32.totalorder %s27, 1
      %p155 = por %p153, %p154
      %p156 = scmp.ne.s32.totalorder %s147, %s148
      %p157 = scmp.eq.s32.totalorder %s27, 0
      %p158 = por %p156, %p157
      %p159 = scmp.ne.s32.totalorder %s147, %s148
      %p160 = scmp.eq.s32.totalorder %s28, 1
      %p161 = por %p159, %p160
      %p163 = scmp.ne.s32.totalorder %s148, %s162
      %p164 = scmp.eq.s32.totalorder %s28, 0
      %p165 = por %p163, %p164
      %s167 = sadd.s32 %s166, 1
      %p170 = scmp.eq.s32.totalorder %s22, 1
      %p171 = scmp.ne.s32.totalorder %s166, %s168
      %p172 = scmp.eq.s32.totalorder %s22, 0
      %p173 = por %p171, %p172
      %p174 = scmp.ne.s32.totalorder %s166, %s168
      %p175 = scmp.eq.s32.totalorder %s27, 1
      %p176 = por %p174, %p175
      %p177 = scmp.ne.s32.totalorder %s168, %s169
      %p178 = scmp.eq.s32.totalorder %s27, 0
      %p179 = por %p177, %p178
      %p180 = scmp.ne.s32.totalorder %s168, %s169
      %p181 = scmp.eq.s32.totalorder %s28, 1
      %p182 = por %p180, %p181
      %p184 = scmp.ne.s32.totalorder %s169, %s183
      %p185 = scmp.eq.s32.totalorder %s28, 0
      %p186 = por %p184, %p185
      %s188 = sadd.s32 %s187, 1
      %p191 = scmp.eq.s32.totalorder %s22, 1
      %p192 = scmp.ne.s32.totalorder %s187, %s189
      %p193 = scmp.eq.s32.totalorder %s22, 0
      %p194 = por %p192, %p193
      %p195 = scmp.ne.s32.totalorder %s187, %s189
      %p196 = scmp.eq.s32.totalorder %s27, 1
      %p197 = por %p195, %p196
      %p198 = scmp.ne.s32.totalorder %s189, %s190
      %p199 = scmp.eq.s32.totalorder %s27, 0
      %p200 = por %p198, %p199
      %p201 = scmp.ne.s32.totalorder %s189, %s190
      %p202 = scmp.eq.s32.totalorder %s28, 1
      %p203 = por %p201, %p202
      %p205 = scmp.ne.s32.totalorder %s190, %s204
      %p206 = scmp.eq.s32.totalorder %s28, 0
      %p207 = por %p205, %p206
      %s209 = sadd.s32 %s208, 1
      %p212 = scmp.eq.s32.totalorder %s22, 1
      %p213 = scmp.ne.s32.totalorder %s208, %s210
      %p214 = scmp.eq.s32.totalorder %s22, 0
      %p215 = por %p213, %p214
      %p216 = scmp.ne.s32.totalorder %s208, %s210
      %p217 = scmp.eq.s32.totalorder %s27, 1
      %p218 = por %p216, %p217
      %p219 = scmp.ne.s32.totalorder %s210, %s211
      %p220 = scmp.eq.s32.totalorder %s27, 0
      %p221 = por %p219, %p220
      %p222 = scmp.ne.s32.totalorder %s210, %s211
      %p223 = scmp.eq.s32.totalorder %s28, 1
      %p224 = por %p222, %p223
      %p226 = scmp.ne.s32.totalorder %s211, %s225
      %p227 = scmp.eq.s32.totalorder %s28, 0
      %p228 = por %p226, %p227
      %s230 = sadd.s32 %s229, 1
      %p233 = scmp.eq.s32.totalorder %s22, 1
      %p234 = scmp.ne.s32.totalorder %s229, %s231
      %p235 = scmp.eq.s32.totalorder %s22, 0
      %p236 = por %p234, %p235
      %p237 = scmp.ne.s32.totalorder %s229, %s231
      %p238 = scmp.eq.s32.totalorder %s27, 1
      %p239 = por %p237, %p238
      %p240 = scmp.ne.s32.totalorder %s231, %s232
      %p241 = scmp.eq.s32.totalorder %s27, 0
      %p242 = por %p240, %p241
      %p243 = scmp.ne.s32.totalorder %s231, %s232
      %p244 = scmp.eq.s32.totalorder %s28, 1
      %p245 = por %p243, %p244
      %p247 = scmp.ne.s32.totalorder %s232, %s246
      %p248 = scmp.eq.s32.totalorder %s28, 0
      %p249 = por %p247, %p248
      %s251 = sadd.s32 %s250, 1
      %p254 = scmp.eq.s32.totalorder %s22, 1
      %p255 = scmp.ne.s32.totalorder %s250, %s252
      %p256 = scmp.eq.s32.totalorder %s22, 0
      %p257 = por %p255, %p256
      %p258 = scmp.ne.s32.totalorder %s250, %s252
      %p259 = scmp.eq.s32.totalorder %s27, 1
      %p260 = por %p258, %p259
      %p261 = scmp.ne.s32.totalorder %s252, %s253
      %p262 = scmp.eq.s32.totalorder %s27, 0
      %p263 = por %p261, %p262
      %p264 = scmp.ne.s32.totalorder %s252, %s253
      %p265 = scmp.eq.s32.totalorder %s28, 1
      %p266 = por %p264, %p265
      %p268 = scmp.ne.s32.totalorder %s253, %s267
      %p269 = scmp.eq.s32.totalorder %s28, 0
      %p270 = por %p268, %p269
      %s272 = sadd.s32 %s271, 1
      %p275 = scmp.eq.s32.totalorder %s22, 1
      %p276 = scmp.ne.s32.totalorder %s271, %s273
      %p277 = scmp.eq.s32.totalorder %s22, 0
      %p278 = por %p276, %p277
      %p279 = scmp.ne.s32.totalorder %s271, %s273
      %p280 = scmp.eq.s32.totalorder %s27, 1
      %p281 = por %p279, %p280
      %p282 = scmp.ne.s32.totalorder %s273, %s274
      %p283 = scmp.eq.s32.totalorder %s27, 0
      %p284 = por %p282, %p283
      %p285 = scmp.ne.s32.totalorder %s273, %s274
      %p286 = scmp.eq.s32.totalorder %s28, 1
      %p287 = por %p285, %p286
      %p289 = scmp.ne.s32.totalorder %s274, %s288
      %p290 = scmp.eq.s32.totalorder %s28, 0
      %p291 = por %p289, %p290
      %s292 = ssub.s32 %s22, %s29
      %p293 = scmp.eq.s32.totalorder %s292, 0
      %s295 = sadd.s32 %s294, 1
      %s296 = scalar_select %p293, %s294, %s295
      %p299 = pneg %p293
      %p300 = scmp.eq.s32.totalorder %s22, 1
      %p301 = por %p299, %p300
      %p302 = scmp.ne.s32.totalorder %s294, %s297
      %p303 = scmp.eq.s32.totalorder %s22, 0
      %p304 = por %p302, %p303
      %p305 = scmp.ne.s32.totalorder %s294, %s297
      %p306 = scmp.eq.s32.totalorder %s27, 1
      %p307 = por %p305, %p306
      %p308 = scmp.ne.s32.totalorder %s297, %s298
      %p309 = scmp.eq.s32.totalorder %s27, 0
      %p310 = por %p308, %p309
      %p311 = scmp.ne.s32.totalorder %s297, %s298
      %p312 = scmp.eq.s32.totalorder %s28, 1
      %p313 = por %p311, %p312
      %p315 = scmp.ne.s32.totalorder %s298, %s314
      %p316 = scmp.eq.s32.totalorder %s28, 0
      %p317 = por %p315, %p316
      %p318 = scmp.le.s32.totalorder 1, %s22
      %p319 = scmp.lt.s32.totalorder %s22, 3
      %p320 = pnand %p318, %p319
      %p321 = pneg %p320
      // Predicated region
      $region9: #{tpu_custom_call.1} parent=5 // pred_check
        _
      $region10: #{tpu_custom_call.1} parent=5 // pred_check_branch
        %323 = sbr.rel (%p320) target = $region12
      $region11: #{tpu_custom_call.1} parent=5 // pred_region
        %s324 = ssub.s32 %s22, 1
        // Predicated region
        $region13: #{tpu_custom_call.1} parent=11 // pred_check
          %p325 = pneg %p95
        $region14: #{tpu_custom_call.1} parent=11 // pred_check_branch
          %327 = sbr.rel (%p325) target = $region16
        $region15: #{tpu_custom_call.1} parent=11 // pred_region
          _
        $region16: #{tpu_custom_call.1} parent=11 // pred_fallthru
          _
        // Predicated region
        $region17: #{tpu_custom_call.1} parent=11 // pred_check
          %p328 = pneg %p116
        $region18: #{tpu_custom_call.1} parent=11 // pred_check_branch
          %330 = sbr.rel (%p328) target = $region20
        $region19: #{tpu_custom_call.1} parent=11 // pred_region
          _
        $region20: #{tpu_custom_call.1} parent=11 // pred_fallthru
          _
        // Predicated region
        $region21: #{tpu_custom_call.1} parent=11 // pred_check
          %p331 = pneg %p137
        $region22: #{tpu_custom_call.1} parent=11 // pred_check_branch
          %333 = sbr.rel (%p331) target = $region24
        $region23: #{tpu_custom_call.1} parent=11 // pred_region
          _
        $region24: #{tpu_custom_call.1} parent=11 // pred_fallthru
          _
        // Predicated region
        $region25: #{tpu_custom_call.1} parent=11 // pred_check
          %p334 = pneg %p158
        $region26: #{tpu_custom_call.1} parent=11 // pred_check_branch
          %336 = sbr.rel (%p334) target = $region28
        $region27: #{tpu_custom_call.1} parent=11 // pred_region
          _
        $region28: #{tpu_custom_call.1} parent=11 // pred_fallthru
          _
        // Predicated region
        $region29: #{tpu_custom_call.1} parent=11 // pred_check
          %p337 = pneg %p179
        $region30: #{tpu_custom_call.1} parent=11 // pred_check_branch
          %339 = sbr.rel (%p337) target = $region32
        $region31: #{tpu_custom_call.1} parent=11 // pred_region
          %341 = vsyncadd [#allocation3], 0
          %s342 = sshll.u32 %s6, 4
          %s343 = int_to_ptr.hbm [resolvable:$true] %s342
          %s344 = sshll.u32 [#allocation2], 4
          %s345 = int_to_ptr.vmem [resolvable:$true] %s344
          %350 = dma.hbm_to_vmem [thread:$0]  %s343, 256, %s345, [#allocation3], 64, 64, 4
        $region32: #{tpu_custom_call.1} parent=11 // pred_fallthru
          _
        // Predicated region
        $region33: #{tpu_custom_call.1} parent=11 // pred_check
          %p351 = pneg %p200
        $region34: #{tpu_custom_call.1} parent=11 // pred_check_branch
          %353 = sbr.rel (%p351) target = $region36
        $region35: #{tpu_custom_call.1} parent=11 // pred_region
          _
        $region36: #{tpu_custom_call.1} parent=11 // pred_fallthru
          _
        // Predicated region
        $region37: #{tpu_custom_call.1} parent=11 // pred_check
          %p354 = pneg %p221
        $region38: #{tpu_custom_call.1} parent=11 // pred_check_branch
          %356 = sbr.rel (%p354) target = $region40
        $region39: #{tpu_custom_call.1} parent=11 // pred_region
          _
        $region40: #{tpu_custom_call.1} parent=11 // pred_fallthru
          _
        // Predicated region
        $region41: #{tpu_custom_call.1} parent=11 // pred_check
          %p357 = pneg %p242
        $region42: #{tpu_custom_call.1} parent=11 // pred_check_branch
          %359 = sbr.rel (%p357) target = $region44
        $region43: #{tpu_custom_call.1} parent=11 // pred_region
          _
        $region44: #{tpu_custom_call.1} parent=11 // pred_fallthru
          _
        // Predicated region
        $region45: #{tpu_custom_call.1} parent=11 // pred_check
          %p360 = pneg %p263
        $region46: #{tpu_custom_call.1} parent=11 // pred_check_branch
          %362 = sbr.rel (%p360) target = $region48
        $region47: #{tpu_custom_call.1} parent=11 // pred_region
          _
        $region48: #{tpu_custom_call.1} parent=11 // pred_fallthru
          _
        // Predicated region
        $region49: #{tpu_custom_call.1} parent=11 // pred_check
          %p363 = pneg %p284
        $region50: #{tpu_custom_call.1} parent=11 // pred_check_branch
          %365 = sbr.rel (%p363) target = $region52
        $region51: #{tpu_custom_call.1} parent=11 // pred_region
          _
        $region52: #{tpu_custom_call.1} parent=11 // pred_fallthru
          _
      $region12: #{tpu_custom_call.1} parent=5 // pred_fallthru
        _
      %p366 = scmp.lt.s32.totalorder %s22, 2
      // Predicated region
      $region53: #{tpu_custom_call.1} parent=5 // pred_check
        %p367 = pneg %p366
      $region54: #{tpu_custom_call.1} parent=5 // pred_check_branch
        %369 = sbr.rel (%p367) target = $region56
      $region55: #{tpu_custom_call.1} parent=5 // pred_region
        // Predicated region
        $region57: #{tpu_custom_call.1} parent=55 // pred_check
          %p370 = pneg %p42
        $region58: #{tpu_custom_call.1} parent=55 // pred_check_branch
          %372 = sbr.rel (%p370) target = $region60
        $region59: #{tpu_custom_call.1} parent=55 // pred_region
          %p373 = scmp.lt.s32.totalorder %s22, 1
          %s374 = scalar_select %p373, %s22, 1
          %s375 = smul.addr %s374, 8
          %s376 = scalar_lea.vmem %s0, %s375
        $region60: #{tpu_custom_call.1} parent=55 // pred_fallthru
          _
        // Predicated region
        $region61: #{tpu_custom_call.1} parent=55 // pred_check
          %p377 = pneg %p68
        $region62: #{tpu_custom_call.1} parent=55 // pred_check_branch
          %379 = sbr.rel (%p377) target = $region64
        $region63: #{tpu_custom_call.1} parent=55 // pred_region
          %p380 = scmp.lt.s32.totalorder %s22, 1
          %s381 = scalar_select %p380, %s22, 1
          %s382 = scalar_lea.vmem %s1, %s381
        $region64: #{tpu_custom_call.1} parent=55 // pred_fallthru
          _
      $region56: #{tpu_custom_call.1} parent=5 // pred_fallthru
        _
      %p383 = scmp.le.s32.totalorder 1, %s22
      %p384 = scmp.lt.s32.totalorder %s22, 3
      %p385 = pnand %p383, %p384
      %p386 = pneg %p385
      // Predicated region
      $region65: #{tpu_custom_call.1} parent=5 // pred_check
        _
      $region66: #{tpu_custom_call.1} parent=5 // pred_check_branch
        %388 = sbr.rel (%p385) target = $region68
      $region67: #{tpu_custom_call.1} parent=5 // pred_region
        %s389 = ssub.s32 %s22, 1
        // Predicated region
        $region69: #{tpu_custom_call.1} parent=67 // pred_check
          %p390 = pneg %p179
        $region70: #{tpu_custom_call.1} parent=67 // pred_check_branch
          %392 = sbr.rel (%p390) target = $region72
        $region71: #{tpu_custom_call.1} parent=67 // pred_region
          %394 = dma.done [#allocation3], 256
        $region72: #{tpu_custom_call.1} parent=67 // pred_fallthru
          _
        %p395 = scmp.lt.s32.totalorder %s27, 1
        %s396 = scalar_select %p395, %s27, 1
        %s397 = smul.addr %s396, 8
        %s398 = scalar_lea.vmem %s0, %s397
        %p399 = pneg %p48
        %p400 = pneg %p45
        %p401 = scmp.lt.s32.totalorder %s27, 1
        %s402 = scalar_select %p401, %s27, 1
        %s403 = scalar_lea.vmem %s1, %s402
        %p404 = pneg %p74
        %p405 = pneg %p71
        %p406 = pneg %p95
        %p407 = pneg %p92
        %p408 = pneg %p116
        %p409 = pneg %p113
        %p410 = pneg %p137
        %p411 = pneg %p134
        %p412 = pneg %p158
        %p413 = pneg %p155
        %p414 = pneg %p179
        %p415 = pneg %p176
        %p416 = pneg %p200
        %p417 = pneg %p197
        %p418 = pneg %p221
        %p419 = pneg %p218
        %p420 = pneg %p242
        %p421 = pneg %p239
        %p422 = pneg %p263
        %p423 = pneg %p260
        %p424 = pneg %p284
        %p425 = pneg %p281
        %p426 = pneg %p310
        %p427 = pneg %p307
        %s428 = sand.u32 %s297, 1
        %s429 = scalar_lea.sflag [#allocation4], %s428
        %s430 = sand.u32 %s297, 1
        %s431 = smul.addr %s430, 8
        %s432 = scalar_lea.vmem [#allocation5], %s431
        %p433 = scmp.lt.s32.totalorder %s27, 1
        %s434 = scalar_select %p433, %s27, 1
        %s435 = smul.addr %s434, 8
        %s436 = scalar_lea.vmem %s0, %s435
        %p437 = scmp.lt.s32.totalorder %s27, 1
        %s438 = scalar_select %p437, %s27, 1
        %s439 = scalar_lea.vmem %s1, %s438
        %v441 = vld [vmem:[%s436] sm:$0xff]
        %v442 = vpack.c.bf16 %v441, %v441
        %v443 = vld [vmem:[%s2] sm:$0xf]
        %v444 = vld [vmem:[%s2 + $0x4] sm:$0xf]
        %v445 = vld [vmem:[%s2 + $0x8] sm:$0xf]
        %v446 = vld [vmem:[%s2 + $0xc] sm:$0xf]
        %v447 = vld [vmem:[%s3] sm:$0x1]
        %v449 = vperm.slane %v447, 0
        %v455 = vunpack.c.l.b16 %v443
        %v456 = vunpack.c.l.b16 %v444
        %v457 = vunpack.c.l.b16 %v445
        %v458 = vunpack.c.l.b16 %v446
        %v459 = vpack.c.b16 %v456, %v455
        %v460 = vpack.c.b16 %v458, %v457
        %vm463 = vcmask 261120
        %v465 = vsel %vm463, %v442, 0
        %467 = vmatpush.bf16.msra.mxu0 0
        %468 = vmatpush.bf16.msra.mxu0 0
        %469 = vmatpush.bf16.msra.mxu0 0
        %470 = vmatpush.bf16.msra.mxu0 0
        %471 = vmatpush.bf16.msra.mxu0 0
        %472 = vmatpush.bf16.msra.mxu0 0
        %473 = vmatpush.bf16.msra.mxu0 %v460
        %474 = vmatpush.bf16.msra.mxu0 %v459
        %475 = vmatmul.bf16.gmra.mxu0 %v465
        %v476 = vpop.f32.mrf.mxu0
        %v477 = vadd.f32 %v449, %v476
        %v478 = vpop.f32.mrf.mxu0
        %479 = vdwg.mxu0
        %481 = vrot.lane.b32.xlu0 %v477, 120
        %v482 = vpop.permute.xlu0 %481
        %484 = vrot.lane.b32.xlu0 %v477, 112
        %v485 = vpop.permute.xlu0 %484
        %487 = vrot.lane.b32.xlu0 %v477, 104
        %v488 = vpop.permute.xlu0 %487
        %v490 = vrot.slane %v485, 4
        %vm491 = vcmask 1047556
        %v492 = vsel %vm491, %v490, %v477
        %v493 = vrot.slane %v477, 4
        %v494 = vsel %vm491, %v485, %v493
        %v496 = vunpack.c.l.s4 1983009808
        %v497 = vunpack.c.0.s8 %v496
        %v498 = vperm.slane %v492, %v497
        %v500 = vunpack.c.l.s4 1983009808
        %v501 = vunpack.c.0.s8 %v500
        %v502 = vperm.slane %v494, %v501
        %v503 = vrot.slane %v488, 4
        %v504 = vsel %vm491, %v503, %v482
        %v505 = vrot.slane %v482, 4
        %v506 = vsel %vm491, %v488, %v505
        %v508 = vunpack.c.l.s4 1983009808
        %v509 = vunpack.c.0.s8 %v508
        %v510 = vperm.slane %v504, %v509
        %v512 = vunpack.c.l.s4 1983009808
        %v513 = vunpack.c.0.s8 %v512
        %v514 = vperm.slane %v506, %v513
        %v515 = vrot.slane %v510, 4
        %v516 = vsel %vm491, %v515, %v498
        %v517 = vrot.slane %v498, 4
        %v518 = vsel %vm491, %v510, %v517
        %v520 = vunpack.c.l.s4 1934713408
        %v521 = vunpack.c.0.s8 %v520
        %v522 = vperm.slane %v516, %v521
        %v524 = vunpack.c.l.s4 1934713408
        %v525 = vunpack.c.0.s8 %v524
        %v526 = vperm.slane %v518, %v525
        %v527 = vrot.slane %v514, 4
        %v528 = vsel %vm491, %v527, %v502
        %v529 = vrot.slane %v502, 4
        %v530 = vsel %vm491, %v514, %v529
        %v532 = vunpack.c.l.s4 1934713408
        %v533 = vunpack.c.0.s8 %v532
        %v534 = vperm.slane %v528, %v533
        %v536 = vunpack.c.l.s4 1934713408
        %v537 = vunpack.c.0.s8 %v536
        %v538 = vperm.slane %v530, %v537
        %v539 = vrot.slane %v522, 4
        %v540 = vsel %vm491, 0.0, %v539
        %v541 = vrot.slane %v526, 4
        %v542 = vsel %vm491, 0.0, %v541
        %v543 = vrot.slane %v534, 4
        %v544 = vsel %vm491, 0.0, %v543
        %v545 = vrot.slane %v538, 4
        %v546 = vsel %vm491, 0.0, %v545
        %v547 = vsel %vm491, %v541, %v522
        %v549 = vunpack.c.l.s4 1983009808
        %v550 = vunpack.c.0.s8 %v549
        %v551 = vperm.slane %v547, %v550
        %v552 = vrot.slane %v542, 4
        %v553 = vsel %vm491, %v552, %v540
        %v555 = vunpack.c.l.s4 1983009808
        %v556 = vunpack.c.0.s8 %v555
        %v557 = vperm.slane %v553, %v556
        %v558 = vsel %vm491, %v545, %v534
        %v560 = vunpack.c.l.s4 1983009808
        %v561 = vunpack.c.0.s8 %v560
        %v562 = vperm.slane %v558, %v561
        %v563 = vrot.slane %v546, 4
        %v564 = vsel %vm491, %v563, %v544
        %v566 = vunpack.c.l.s4 1983009808
        %v567 = vunpack.c.0.s8 %v566
        %v568 = vperm.slane %v564, %v567
        %v569 = vrot.slane %v557, 4
        %v570 = vsel %vm491, %v569, %v551
        %v571 = vrot.slane %v551, 4
        %v572 = vsel %vm491, %v557, %v571
        %v574 = vunpack.c.l.s4 1934713408
        %v575 = vunpack.c.0.s8 %v574
        %v576 = vperm.slane %v570, %v575
        %v578 = vunpack.c.l.s4 1934713408
        %v579 = vunpack.c.0.s8 %v578
        %v580 = vperm.slane %v572, %v579
        %v581 = vrot.slane %v568, 4
        %v582 = vsel %vm491, %v581, %v562
        %v583 = vrot.slane %v562, 4
        %v584 = vsel %vm491, %v568, %v583
        %v586 = vunpack.c.l.s4 1934713408
        %v587 = vunpack.c.0.s8 %v586
        %v588 = vperm.slane %v582, %v587
        %v590 = vunpack.c.l.s4 1934713408
        %v591 = vunpack.c.0.s8 %v590
        %v592 = vperm.slane %v584, %v591
        %v593 = vrot.slane %v588, 4
        %v594 = vsel %vm491, %v593, %v576
        %v595 = vrot.slane %v576, 4
        %v596 = vsel %vm491, %v588, %v595
        %v597 = vrot.slane %v592, 4
        %v598 = vsel %vm491, %v597, %v580
        %v599 = vrot.slane %v580, 4
        %v600 = vsel %vm491, %v592, %v599
        %601 = vrot.lane.b32.xlu0 %v477, 96
        %v602 = vpop.permute.xlu0 %601
        %603 = vrot.lane.b32.xlu0 %v482, 96
        %v604 = vpop.permute.xlu0 %603
        %605 = vrot.lane.b32.xlu0 %v485, 96
        %v606 = vpop.permute.xlu0 %605
        %607 = vrot.lane.b32.xlu0 %v488, 96
        %v608 = vpop.permute.xlu0 %607
        %v613 = vrot.slane %v606, 4
        %v614 = vsel %vm491, %v613, %v602
        %v615 = vrot.slane %v602, 4
        %v616 = vsel %vm491, %v606, %v615
        %v618 = vunpack.c.l.s4 1983009808
        %v619 = vunpack.c.0.s8 %v618
        %v620 = vperm.slane %v614, %v619
        %v622 = vunpack.c.l.s4 1983009808
        %v623 = vunpack.c.0.s8 %v622
        %v624 = vperm.slane %v616, %v623
        %v625 = vrot.slane %v608, 4
        %v626 = vsel %vm491, %v625, %v604
        %v627 = vrot.slane %v604, 4
        %v628 = vsel %vm491, %v608, %v627
        %v630 = vunpack.c.l.s4 1983009808
        %v631 = vunpack.c.0.s8 %v630
        %v632 = vperm.slane %v626, %v631
        %v634 = vunpack.c.l.s4 1983009808
        %v635 = vunpack.c.0.s8 %v634
        %v636 = vperm.slane %v628, %v635
        %v637 = vrot.slane %v632, 4
        %v638 = vsel %vm491, %v637, %v620
        %v639 = vrot.slane %v620, 4
        %v640 = vsel %vm491, %v632, %v639
        %v642 = vunpack.c.l.s4 1934713408
        %v643 = vunpack.c.0.s8 %v642
        %v644 = vperm.slane %v638, %v643
        %v646 = vunpack.c.l.s4 1934713408
        %v647 = vunpack.c.0.s8 %v646
        %v648 = vperm.slane %v640, %v647
        %v649 = vrot.slane %v636, 4
        %v650 = vsel %vm491, %v649, %v624
        %v651 = vrot.slane %v624, 4
        %v652 = vsel %vm491, %v636, %v651
        %v654 = vunpack.c.l.s4 1934713408
        %v655 = vunpack.c.0.s8 %v654
        %v656 = vperm.slane %v650, %v655
        %v658 = vunpack.c.l.s4 1934713408
        %v659 = vunpack.c.0.s8 %v658
        %v660 = vperm.slane %v652, %v659
        %v661 = vrot.slane %v644, 4
        %v662 = vsel %vm491, 0.0, %v661
        %v663 = vrot.slane %v648, 4
        %v664 = vsel %vm491, 0.0, %v663
        %v665 = vrot.slane %v656, 4
        %v666 = vsel %vm491, 0.0, %v665
        %v667 = vrot.slane %v660, 4
        %v668 = vsel %vm491, 0.0, %v667
        %v669 = vsel %vm491, %v663, %v644
        %v671 = vunpack.c.l.s4 1983009808
        %v672 = vunpack.c.0.s8 %v671
        %v673 = vperm.slane %v669, %v672
        %v674 = vrot.slane %v664, 4
        %v675 = vsel %vm491, %v674, %v662
        %v677 = vunpack.c.l.s4 1983009808
        %v678 = vunpack.c.0.s8 %v677
        %v679 = vperm.slane %v675, %v678
        %v680 = vsel %vm491, %v667, %v656
        %v682 = vunpack.c.l.s4 1983009808
        %v683 = vunpack.c.0.s8 %v682
        %v684 = vperm.slane %v680, %v683
        %v685 = vrot.slane %v668, 4
        %v686 = vsel %vm491, %v685, %v666
        %v688 = vunpack.c.l.s4 1983009808
        %v689 = vunpack.c.0.s8 %v688
        %v690 = vperm.slane %v686, %v689
        %v691 = vrot.slane %v679, 4
        %v692 = vsel %vm491, %v691, %v673
        %v693 = vrot.slane %v673, 4
        %v694 = vsel %vm491, %v679, %v693
        %v696 = vunpack.c.l.s4 1934713408
        %v697 = vunpack.c.0.s8 %v696
        %v698 = vperm.slane %v692, %v697
        %v700 = vunpack.c.l.s4 1934713408
        %v701 = vunpack.c.0.s8 %v700
        %v702 = vperm.slane %v694, %v701
        %v703 = vrot.slane %v690, 4
        %v704 = vsel %vm491, %v703, %v684
        %v705 = vrot.slane %v684, 4
        %v706 = vsel %vm491, %v690, %v705
        %v708 = vunpack.c.l.s4 1934713408
        %v709 = vunpack.c.0.s8 %v708
        %v710 = vperm.slane %v704, %v709
        %v712 = vunpack.c.l.s4 1934713408
        %v713 = vunpack.c.0.s8 %v712
        %v714 = vperm.slane %v706, %v713
        %v715 = vrot.slane %v710, 4
        %v716 = vsel %vm491, %v715, %v698
        %v717 = vrot.slane %v698, 4
        %v718 = vsel %vm491, %v710, %v717
        %v719 = vrot.slane %v714, 4
        %v720 = vsel %vm491, %v719, %v702
        %v721 = vrot.slane %v702, 4
        %v722 = vsel %vm491, %v714, %v721
        %723 = vrot.lane.b32.xlu0 %v477, 64
        %v724 = vpop.permute.xlu0 %723
        %725 = vrot.lane.b32.xlu0 %v482, 64
        %v726 = vpop.permute.xlu0 %725
        %727 = vrot.lane.b32.xlu0 %v485, 64
        %v728 = vpop.permute.xlu0 %727
        %729 = vrot.lane.b32.xlu0 %v488, 64
        %v730 = vpop.permute.xlu0 %729
        %v735 = vrot.slane %v728, 4
        %v736 = vsel %vm491, %v735, %v724
        %v737 = vrot.slane %v724, 4
        %v738 = vsel %vm491, %v728, %v737
        %v740 = vunpack.c.l.s4 1983009808
        %v741 = vunpack.c.0.s8 %v740
        %v742 = vperm.slane %v736, %v741
        %v744 = vunpack.c.l.s4 1983009808
        %v745 = vunpack.c.0.s8 %v744
        %v746 = vperm.slane %v738, %v745
        %v747 = vrot.slane %v730, 4
        %v748 = vsel %vm491, %v747, %v726
        %v749 = vrot.slane %v726, 4
        %v750 = vsel %vm491, %v730, %v749
        %v752 = vunpack.c.l.s4 1983009808
        %v753 = vunpack.c.0.s8 %v752
        %v754 = vperm.slane %v748, %v753
        %v756 = vunpack.c.l.s4 1983009808
        %v757 = vunpack.c.0.s8 %v756
        %v758 = vperm.slane %v750, %v757
        %v759 = vrot.slane %v754, 4
        %v760 = vsel %vm491, %v759, %v742
        %v761 = vrot.slane %v742, 4
        %v762 = vsel %vm491, %v754, %v761
        %v764 = vunpack.c.l.s4 1934713408
        %v765 = vunpack.c.0.s8 %v764
        %v766 = vperm.slane %v760, %v765
        %v768 = vunpack.c.l.s4 1934713408
        %v769 = vunpack.c.0.s8 %v768
        %v770 = vperm.slane %v762, %v769
        %v771 = vrot.slane %v758, 4
        %v772 = vsel %vm491, %v771, %v746
        %v773 = vrot.slane %v746, 4
        %v774 = vsel %vm491, %v758, %v773
        %v776 = vunpack.c.l.s4 1934713408
        %v777 = vunpack.c.0.s8 %v776
        %v778 = vperm.slane %v772, %v777
        %v780 = vunpack.c.l.s4 1934713408
        %v781 = vunpack.c.0.s8 %v780
        %v782 = vperm.slane %v774, %v781
        %v783 = vrot.slane %v766, 4
        %v784 = vsel %vm491, 0.0, %v783
        %v785 = vrot.slane %v770, 4
        %v786 = vsel %vm491, 0.0, %v785
        %v787 = vrot.slane %v778, 4
        %v788 = vsel %vm491, 0.0, %v787
        %v789 = vrot.slane %v782, 4
        %v790 = vsel %vm491, 0.0, %v789
        %v791 = vsel %vm491, %v785, %v766
        %v793 = vunpack.c.l.s4 1983009808
        %v794 = vunpack.c.0.s8 %v793
        %v795 = vperm.slane %v791, %v794
        %v796 = vrot.slane %v786, 4
        %v797 = vsel %vm491, %v796, %v784
        %v799 = vunpack.c.l.s4 1983009808
        %v800 = vunpack.c.0.s8 %v799
        %v801 = vperm.slane %v797, %v800
        %v802 = vsel %vm491, %v789, %v778
        %v804 = vunpack.c.l.s4 1983009808
        %v805 = vunpack.c.0.s8 %v804
        %v806 = vperm.slane %v802, %v805
        %v807 = vrot.slane %v790, 4
        %v808 = vsel %vm491, %v807, %v788
        %v810 = vunpack.c.l.s4 1983009808
        %v811 = vunpack.c.0.s8 %v810
        %v812 = vperm.slane %v808, %v811
        %v813 = vrot.slane %v801, 4
        %v814 = vsel %vm491, %v813, %v795
        %v815 = vrot.slane %v795, 4
        %v816 = vsel %vm491, %v801, %v815
        %v818 = vunpack.c.l.s4 1934713408
        %v819 = vunpack.c.0.s8 %v818
        %v820 = vperm.slane %v814, %v819
        %v822 = vunpack.c.l.s4 1934713408
        %v823 = vunpack.c.0.s8 %v822
        %v824 = vperm.slane %v816, %v823
        %v825 = vrot.slane %v812, 4
        %v826 = vsel %vm491, %v825, %v806
        %v827 = vrot.slane %v806, 4
        %v828 = vsel %vm491, %v812, %v827
        %v830 = vunpack.c.l.s4 1934713408
        %v831 = vunpack.c.0.s8 %v830
        %v832 = vperm.slane %v826, %v831
        %v834 = vunpack.c.l.s4 1934713408
        %v835 = vunpack.c.0.s8 %v834
        %v836 = vperm.slane %v828, %v835
        %v837 = vrot.slane %v832, 4
        %v838 = vsel %vm491, %v837, %v820
        %v839 = vrot.slane %v820, 4
        %v840 = vsel %vm491, %v832, %v839
        %v841 = vrot.slane %v836, 4
        %v842 = vsel %vm491, %v841, %v824
        %v843 = vrot.slane %v824, 4
        %v844 = vsel %vm491, %v836, %v843
        %v845 = vld [vmem:[%s439] sm:$0x1]
        %v846 = vlaneseq
        %v847 = vand.u32 %v846, 127
        %848 = vset.pattern.permute.xlu0 0
        %849 = vperm.xlu0 %848, %v845
        %v850 = vpop.permute.xlu0 %849
        %v851 = vperm.slane %v850, 0
        %vm852 = vcmp.ge.s32.totalorder %v847, %v851
        %v853 = vsel %vm852, -1e+09, 0.0
        %v854 = vpack.c.bf16 %v594, %v594
        %v855 = vpack.c.bf16 %v596, %v596
        %v856 = vpack.c.bf16 %v598, %v598
        %v857 = vpack.c.bf16 %v600, %v600
        %v858 = vpack.c.bf16 %v716, %v716
        %v859 = vpack.c.bf16 %v718, %v718
        %v860 = vpack.c.bf16 %v720, %v720
        %v861 = vpack.c.bf16 %v722, %v722
        %vm862 = vcmask 64512
        %v864 = vsel %vm862, %v854, 0
        %v867 = vsel %vm862, %v858, 0
        %869 = vmatpush.bf16.xpose.msra.mxu0 0
        %870 = vmatpush.bf16.xpose.msra.mxu0 0
        %871 = vmatpush.bf16.xpose.msra.mxu0 0
        %872 = vmatpush.bf16.xpose.msra.mxu0 0
        %873 = vmatpush.bf16.xpose.msra.mxu0 0
        %874 = vmatpush.bf16.xpose.msra.mxu0 0
        %875 = vmatpush.bf16.xpose.msra.mxu0 0
        %876 = vmatpush.bf16.xpose.msra.mxu0 %v867
        %877 = vmatmul.bf16.gmra.mxu0 %v864
        %v878 = vpop.f32.mrf.mxu0
        %v879 = vadd.f32 %v853, %v878
        %v880 = vpop.f32.mrf.mxu0
        %881 = vdwg.mxu0
        %v883 = vsel %vm862, %v855, 0
        %v886 = vsel %vm862, %v859, 0
        %888 = vmatpush.bf16.xpose.msra.mxu0 0
        %889 = vmatpush.bf16.xpose.msra.mxu0 0
        %890 = vmatpush.bf16.xpose.msra.mxu0 0
        %891 = vmatpush.bf16.xpose.msra.mxu0 0
        %892 = vmatpush.bf16.xpose.msra.mxu0 0
        %893 = vmatpush.bf16.xpose.msra.mxu0 0
        %894 = vmatpush.bf16.xpose.msra.mxu0 0
        %895 = vmatpush.bf16.xpose.msra.mxu0 %v886
        %896 = vmatmul.bf16.gmra.mxu0 %v883
        %v897 = vpop.f32.mrf.mxu0
        %v898 = vadd.f32 %v853, %v897
        %v899 = vpop.f32.mrf.mxu0
        %900 = vdwg.mxu0
        %v902 = vsel %vm862, %v856, 0
        %v905 = vsel %vm862, %v860, 0
        %907 = vmatpush.bf16.xpose.msra.mxu0 0
        %908 = vmatpush.bf16.xpose.msra.mxu0 0
        %909 = vmatpush.bf16.xpose.msra.mxu0 0
        %910 = vmatpush.bf16.xpose.msra.mxu0 0
        %911 = vmatpush.bf16.xpose.msra.mxu0 0
        %912 = vmatpush.bf16.xpose.msra.mxu0 0
        %913 = vmatpush.bf16.xpose.msra.mxu0 0
        %914 = vmatpush.bf16.xpose.msra.mxu0 %v905
        %915 = vmatmul.bf16.gmra.mxu0 %v902
        %v916 = vpop.f32.mrf.mxu0
        %v917 = vadd.f32 %v853, %v916
        %v918 = vpop.f32.mrf.mxu0
        %919 = vdwg.mxu0
        %v921 = vsel %vm862, %v857, 0
        %v924 = vsel %vm862, %v861, 0
        %926 = vmatpush.bf16.xpose.msra.mxu0 0
        %927 = vmatpush.bf16.xpose.msra.mxu0 0
        %928 = vmatpush.bf16.xpose.msra.mxu0 0
        %929 = vmatpush.bf16.xpose.msra.mxu0 0
        %930 = vmatpush.bf16.xpose.msra.mxu0 0
        %931 = vmatpush.bf16.xpose.msra.mxu0 0
        %932 = vmatpush.bf16.xpose.msra.mxu0 0
        %933 = vmatpush.bf16.xpose.msra.mxu0 %v924
        %934 = vmatmul.bf16.gmra.mxu0 %v921
        %v935 = vpop.f32.mrf.mxu0
        %v936 = vadd.f32 %v853, %v935
        %v937 = vpop.f32.mrf.mxu0
        %938 = vdwg.mxu0
        %v939 = vsel %vm862, %v879, -inf
        %940 = vmax.xlane.f32.xlu0 %v939
        %v941 = vpop.xlane.xlu0 %940
        %v942 = vsel %vm862, %v898, -inf
        %943 = vmax.xlane.f32.xlu0 %v942
        %v944 = vpop.xlane.xlu0 %943
        %v945 = vsel %vm862, %v917, -inf
        %946 = vmax.xlane.f32.xlu0 %v945
        %v947 = vpop.xlane.xlu0 %946
        %v948 = vsel %vm862, %v936, -inf
        %949 = vmax.xlane.f32.xlu0 %v948
        %v950 = vpop.xlane.xlu0 %949
        %v951 = vsub.f32 %v879, %v941
        %v952 = vsub.f32 %v898, %v944
        %v953 = vsub.f32 %v917, %v947
        %v954 = vsub.f32 %v936, %v950
        %v955 = vmul.f32 %v951, 1.442695
        %v956 = vpow.pop %v955
        %v957 = vmul.f32 %v952, 1.442695
        %v958 = vpow.pop %v957
        %v959 = vmul.f32 %v953, 1.442695
        %v960 = vpow.pop %v959
        %v961 = vmul.f32 %v954, 1.442695
        %v962 = vpow.pop %v961
        %v963 = vsel %vm862, %v956, 0.0
        %964 = vadd.xlane.f32.xlu0 %v963
        %v965 = vpop.xlane.xlu0 %964
        %v966 = vsel %vm862, %v958, 0.0
        %967 = vadd.xlane.f32.xlu0 %v966
        %v968 = vpop.xlane.xlu0 %967
        %v969 = vsel %vm862, %v960, 0.0
        %970 = vadd.xlane.f32.xlu0 %v969
        %v971 = vpop.xlane.xlu0 %970
        %v972 = vsel %vm862, %v962, 0.0
        %973 = vadd.xlane.f32.xlu0 %v972
        %v974 = vpop.xlane.xlu0 %973
        %v975 = vrcp.pop %v965
        %v976 = vrcp.pop %v968
        %v977 = vrcp.pop %v971
        %v978 = vrcp.pop %v974
        %v979 = vmul.f32 %v956, %v975
        %v980 = vmul.f32 %v958, %v976
        %v981 = vmul.f32 %v960, %v977
        %v982 = vmul.f32 %v962, %v978
        %v983 = vpack.c.bf16 %v979, %v979
        %v984 = vpack.c.bf16 %v980, %v980
        %v985 = vpack.c.bf16 %v981, %v981
        %v986 = vpack.c.bf16 %v982, %v982
        %v987 = vpack.c.bf16 %v838, %v838
        %v988 = vpack.c.bf16 %v840, %v840
        %v989 = vpack.c.bf16 %v842, %v842
        %v990 = vpack.c.bf16 %v844, %v844
        %v992 = vsel %vm862, %v983, 0
        %vm994 = vcmask 1043456
        %v996 = vsel %vm994, %v987, 0
        %998 = vmatpush.bf16.msra.mxu0 0
        %999 = vmatpush.bf16.msra.mxu0 0
        %1000 = vmatpush.bf16.msra.mxu0 0
        %1001 = vmatpush.bf16.msra.mxu0 0
        %1002 = vmatpush.bf16.msra.mxu0 0
        %1003 = vmatpush.bf16.msra.mxu0 0
        %1004 = vmatpush.bf16.msra.mxu0 0
        %1005 = vmatpush.bf16.msra.mxu0 %v996
        %1006 = vmatmul.bf16.gmra.mxu0 %v992
        %v1007 = vpop.f32.mrf.mxu0
        %v1008 = vadd.f32 0.0, %v1007
        %v1009 = vpop.f32.mrf.mxu0
        %1010 = vdwg.mxu0
        %v1012 = vsel %vm862, %v984, 0
        %v1015 = vsel %vm994, %v988, 0
        %1017 = vmatpush.bf16.msra.mxu0 0
        %1018 = vmatpush.bf16.msra.mxu0 0
        %1019 = vmatpush.bf16.msra.mxu0 0
        %1020 = vmatpush.bf16.msra.mxu0 0
        %1021 = vmatpush.bf16.msra.mxu0 0
        %1022 = vmatpush.bf16.msra.mxu0 0
        %1023 = vmatpush.bf16.msra.mxu0 0
        %1024 = vmatpush.bf16.msra.mxu0 %v1015
        %1025 = vmatmul.bf16.gmra.mxu0 %v1012
        %v1026 = vpop.f32.mrf.mxu0
        %v1027 = vadd.f32 0.0, %v1026
        %v1028 = vpop.f32.mrf.mxu0
        %1029 = vdwg.mxu0
        %v1031 = vsel %vm862, %v985, 0
        %v1034 = vsel %vm994, %v989, 0
        %1036 = vmatpush.bf16.msra.mxu0 0
        %1037 = vmatpush.bf16.msra.mxu0 0
        %1038 = vmatpush.bf16.msra.mxu0 0
        %1039 = vmatpush.bf16.msra.mxu0 0
        %1040 = vmatpush.bf16.msra.mxu0 0
        %1041 = vmatpush.bf16.msra.mxu0 0
        %1042 = vmatpush.bf16.msra.mxu0 0
        %1043 = vmatpush.bf16.msra.mxu0 %v1034
        %1044 = vmatmul.bf16.gmra.mxu0 %v1031
        %v1045 = vpop.f32.mrf.mxu0
        %v1046 = vadd.f32 0.0, %v1045
        %v1047 = vpop.f32.mrf.mxu0
        %1048 = vdwg.mxu0
        %v1050 = vsel %vm862, %v986, 0
        %v1053 = vsel %vm994, %v990, 0
        %1055 = vmatpush.bf16.msra.mxu0 0
        %1056 = vmatpush.bf16.msra.mxu0 0
        %1057 = vmatpush.bf16.msra.mxu0 0
        %1058 = vmatpush.bf16.msra.mxu0 0
        %1059 = vmatpush.bf16.msra.mxu0 0
        %1060 = vmatpush.bf16.msra.mxu0 0
        %1061 = vmatpush.bf16.msra.mxu0 0
        %1062 = vmatpush.bf16.msra.mxu0 %v1053
        %1063 = vmatmul.bf16.gmra.mxu0 %v1050
        %v1064 = vpop.f32.mrf.mxu0
        %v1065 = vadd.f32 0.0, %v1064
        %v1066 = vpop.f32.mrf.mxu0
        %1067 = vdwg.mxu0
        %v1068 = vrot.slane %v1046, 4
        %v1069 = vsel %vm491, %v1068, %v1008
        %v1070 = vrot.slane %v1008, 4
        %v1071 = vsel %vm491, %v1046, %v1070
        %v1073 = vunpack.c.l.s4 1983009808
        %v1074 = vunpack.c.0.s8 %v1073
        %v1075 = vperm.slane %v1069, %v1074
        %v1077 = vunpack.c.l.s4 1983009808
        %v1078 = vunpack.c.0.s8 %v1077
        %v1079 = vperm.slane %v1071, %v1078
        %v1080 = vrot.slane %v1065, 4
        %v1081 = vsel %vm491, %v1080, %v1027
        %v1082 = vrot.slane %v1027, 4
        %v1083 = vsel %vm491, %v1065, %v1082
        %v1085 = vunpack.c.l.s4 1983009808
        %v1086 = vunpack.c.0.s8 %v1085
        %v1087 = vperm.slane %v1081, %v1086
        %v1089 = vunpack.c.l.s4 1983009808
        %v1090 = vunpack.c.0.s8 %v1089
        %v1091 = vperm.slane %v1083, %v1090
        %v1092 = vrot.slane %v1087, 4
        %v1093 = vsel %vm491, %v1092, %v1075
        %v1094 = vrot.slane %v1075, 4
        %v1095 = vsel %vm491, %v1087, %v1094
        %v1097 = vunpack.c.l.s4 1934713408
        %v1098 = vunpack.c.0.s8 %v1097
        %v1099 = vperm.slane %v1093, %v1098
        %v1101 = vunpack.c.l.s4 1934713408
        %v1102 = vunpack.c.0.s8 %v1101
        %v1103 = vperm.slane %v1095, %v1102
        %v1104 = vrot.slane %v1091, 4
        %v1105 = vsel %vm491, %v1104, %v1079
        %v1106 = vrot.slane %v1079, 4
        %v1107 = vsel %vm491, %v1091, %v1106
        %v1109 = vunpack.c.l.s4 1934713408
        %v1110 = vunpack.c.0.s8 %v1109
        %v1111 = vperm.slane %v1105, %v1110
        %v1113 = vunpack.c.l.s4 1934713408
        %v1114 = vunpack.c.0.s8 %v1113
        %v1115 = vperm.slane %v1107, %v1114
        %v1116 = vrot.slane %v1099, 4
        %v1117 = vsel %vm491, 0.0, %v1116
        %v1118 = vrot.slane %v1103, 4
        %v1119 = vsel %vm491, 0.0, %v1118
        %v1120 = vrot.slane %v1111, 4
        %v1121 = vsel %vm491, 0.0, %v1120
        %v1122 = vrot.slane %v1115, 4
        %v1123 = vsel %vm491, 0.0, %v1122
        %v1124 = vsel %vm491, %v1118, %v1099
        %v1126 = vunpack.c.l.s4 1983009808
        %v1127 = vunpack.c.0.s8 %v1126
        %v1128 = vperm.slane %v1124, %v1127
        %v1129 = vrot.slane %v1119, 4
        %v1130 = vsel %vm491, %v1129, %v1117
        %v1132 = vunpack.c.l.s4 1983009808
        %v1133 = vunpack.c.0.s8 %v1132
        %v1134 = vperm.slane %v1130, %v1133
        %v1135 = vsel %vm491, %v1122, %v1111
        %v1137 = vunpack.c.l.s4 1983009808
        %v1138 = vunpack.c.0.s8 %v1137
        %v1139 = vperm.slane %v1135, %v1138
        %v1140 = vrot.slane %v1123, 4
        %v1141 = vsel %vm491, %v1140, %v1121
        %v1143 = vunpack.c.l.s4 1983009808
        %v1144 = vunpack.c.0.s8 %v1143
        %v1145 = vperm.slane %v1141, %v1144
        %v1146 = vrot.slane %v1134, 4
        %v1147 = vsel %vm491, %v1146, %v1128
        %v1148 = vrot.slane %v1128, 4
        %v1149 = vsel %vm491, %v1134, %v1148
        %v1151 = vunpack.c.l.s4 1934713408
        %v1152 = vunpack.c.0.s8 %v1151
        %v1153 = vperm.slane %v1147, %v1152
        %v1155 = vunpack.c.l.s4 1934713408
        %v1156 = vunpack.c.0.s8 %v1155
        %v1157 = vperm.slane %v1149, %v1156
        %v1158 = vrot.slane %v1145, 4
        %v1159 = vsel %vm491, %v1158, %v1139
        %v1160 = vrot.slane %v1139, 4
        %v1161 = vsel %vm491, %v1145, %v1160
        %v1163 = vunpack.c.l.s4 1934713408
        %v1164 = vunpack.c.0.s8 %v1163
        %v1165 = vperm.slane %v1159, %v1164
        %v1167 = vunpack.c.l.s4 1934713408
        %v1168 = vunpack.c.0.s8 %v1167
        %v1169 = vperm.slane %v1161, %v1168
        %v1170 = vrot.slane %v1165, 4
        %v1171 = vsel %vm491, %v1170, %v1153
        %v1172 = vrot.slane %v1153, 4
        %v1173 = vsel %vm491, %v1165, %v1172
        %v1174 = vrot.slane %v1169, 4
        %v1175 = vsel %vm491, %v1174, %v1157
        %v1176 = vrot.slane %v1157, 4
        %v1177 = vsel %vm491, %v1169, %v1176
        %1179 = vrot.lane.b32.xlu0 %v1173, 8
        %v1180 = vpop.permute.xlu0 %1179
        %1183 = vrot.lane.b32.xlu0 %v1175, 16
        %v1184 = vpop.permute.xlu0 %1183
        %1187 = vrot.lane.b32.xlu0 %v1177, 24
        %v1188 = vpop.permute.xlu0 %1187
        %v1190 = vsel %vm862, %v1171, %v1180
        %vm1191 = vcmask 130048
        %v1192 = vsel %vm1191, %v1190, %v1184
        %vm1193 = vcmask 195584
        %v1194 = vsel %vm1193, %v1192, %v1188
        %v1195 = vpack.c.bf16 %v1194, %v1194
        %v1196 = vld [vmem:[%s4] sm:$0xf]
        %v1197 = vld [vmem:[%s4 + $0x4] sm:$0xf]
        %v1198 = vld [vmem:[%s4 + $0x8] sm:$0xf]
        %v1199 = vld [vmem:[%s4 + $0xc] sm:$0xf]
        %v1200 = vld [vmem:[%s5] sm:$0x1]
        %v1202 = vperm.slane %v1200, 0
        %v1208 = vunpack.c.l.b16 %v1196
        %v1209 = vunpack.c.l.b16 %v1197
        %v1210 = vunpack.c.l.b16 %v1198
        %v1211 = vunpack.c.l.b16 %v1199
        %v1212 = vpack.c.b16 %v1209, %v1208
        %v1213 = vpack.c.b16 %v1211, %v1210
        %v1217 = vsel %vm463, %v1195, 0
        %1219 = vmatpush.bf16.msra.mxu0 0
        %1220 = vmatpush.bf16.msra.mxu0 0
        %1221 = vmatpush.bf16.msra.mxu0 0
        %1222 = vmatpush.bf16.msra.mxu0 0
        %1223 = vmatpush.bf16.msra.mxu0 0
        %1224 = vmatpush.bf16.msra.mxu0 0
        %1225 = vmatpush.bf16.msra.mxu0 %v1213
        %1226 = vmatpush.bf16.msra.mxu0 %v1212
        %1227 = vmatmul.bf16.gmra.mxu0 %v1217
        %v1228 = vpop.f32.mrf.mxu0
        %v1229 = vadd.f32 %v1202, %v1228
        %v1230 = vpop.f32.mrf.mxu0
        %1231 = vdwg.mxu0
        %v1232 = vld [vmem:[%s10] sm:$0x1]
        %v1233 = vld [vmem:[%s11] sm:$0x1]
        %v1234 = vsel %vm463, %v1229, 0.0
        %1235 = vadd.xlane.f32.xlu0 %v1234
        %v1236 = vpop.xlane.xlu0 %1235
        %v1237 = vrcp.pop 32.0
        %v1238 = vmul.f32 32.0, %v1237
        %v1239 = vsub.f32 1.0, %v1238
        %v1240 = vmul.f32 %v1237, %v1239
        %v1241 = vadd.f32 %v1237, %v1240
        %vm1242 = vweird.f32 %v1237
        %v1243 = vsel %vm1242, %v1237, %v1241
        %v1244 = vmul.f32 %v1236, %v1243
        %v1245 = vmul.f32 %v1229, %v1229
        %v1246 = vsel %vm463, %v1245, 0.0
        %1247 = vadd.xlane.f32.xlu0 %v1246
        %v1248 = vpop.xlane.xlu0 %1247
        %v1249 = vmul.f32 %v1248, %v1243
        %v1250 = vmul.f32 %v1244, %v1244
        %v1251 = vsub.f32 %v1249, %v1250
        %v1252 = vsub.f32 %v1229, %v1244
        %v1253 = vadd.f32 %v1251, 1e-05
        %v1254 = vrsqrt.pop %v1253
        %v1255 = vmul.f32 %v1254, %v1253
        %v1256 = vmul.f32 %v1255, %v1254
        %v1257 = vmul.f32 0.5, %v1256
        %v1258 = vsub.f32 1.5, %v1257
        %v1259 = vmul.f32 %v1254, %v1258
        %vm1260 = vweird.f32 %v1253
        %vm1261 = vweird.f32 %v1254
        %vm1262 = vmor %vm1260, %vm1261
        %v1263 = vsel %vm1262, %v1254, %v1259
        %v1264 = vmul.f32 %v1252, %v1263
        %v1266 = vperm.slane %v1232, 0
        %v1268 = vmul.f32 %v1264, %v1266
        %v1270 = vperm.slane %v1233, 0
        %v1272 = vadd.f32 %v1268, %v1270
        %v1273 = vadd.f32 %v441, %v1272
        %v1274 = vpack.c.bf16 %v1273, %v1273
        %v1275 = vld [vmem:[#allocation2] sm:$0xf]
        %v1276 = vld [vmem:[#allocation2 + $0x4] sm:$0xf]
        %v1277 = vld [vmem:[#allocation2 + $0x8] sm:$0xf]
        %v1278 = vld [vmem:[#allocation2 + $0xc] sm:$0xf]
        %v1279 = vld [vmem:[%s7] sm:$0x1]
        %v1281 = vperm.slane %v1279, 0
        %v1287 = vunpack.c.l.b16 %v1275
        %v1288 = vunpack.c.l.b16 %v1276
        %v1289 = vunpack.c.l.b16 %v1277
        %v1290 = vunpack.c.l.b16 %v1278
        %v1291 = vpack.c.b16 %v1288, %v1287
        %v1292 = vpack.c.b16 %v1290, %v1289
        %v1296 = vsel %vm463, %v1274, 0
        %1298 = vmatpush.bf16.msra.mxu0 0
        %1299 = vmatpush.bf16.msra.mxu0 0
        %1300 = vmatpush.bf16.msra.mxu0 0
        %1301 = vmatpush.bf16.msra.mxu0 0
        %1302 = vmatpush.bf16.msra.mxu0 0
        %1303 = vmatpush.bf16.msra.mxu0 0
        %1304 = vmatpush.bf16.msra.mxu0 %v1292
        %1305 = vmatpush.bf16.msra.mxu0 %v1291
        %1306 = vmatmul.bf16.gmra.mxu0 %v1296
        %v1307 = vpop.f32.mrf.mxu0
        %v1308 = vadd.f32 %v1281, %v1307
        %v1309 = vpop.f32.mrf.mxu0
        %1310 = vdwg.mxu0
        %v1311 = vmax.f32 %v1308, 0.0
        %v1312 = vpack.c.bf16 %v1311, %v1311
        %v1313 = vld [vmem:[%s8] sm:$0xf]
        %v1314 = vld [vmem:[%s8 + $0x4] sm:$0xf]
        %v1315 = vld [vmem:[%s8 + $0x8] sm:$0xf]
        %v1316 = vld [vmem:[%s8 + $0xc] sm:$0xf]
        %v1317 = vld [vmem:[%s8 + $0x10] sm:$0xf]
        %v1318 = vld [vmem:[%s8 + $0x14] sm:$0xf]
        %v1319 = vld [vmem:[%s8 + $0x18] sm:$0xf]
        %v1320 = vld [vmem:[%s8 + $0x1c] sm:$0xf]
        %v1321 = vld [vmem:[%s9] sm:$0x1]
        %v1323 = vperm.slane %v1321, 0
        %v1333 = vunpack.c.l.b16 %v1313
        %v1334 = vunpack.c.l.b16 %v1314
        %v1335 = vunpack.c.l.b16 %v1315
        %v1336 = vunpack.c.l.b16 %v1316
        %v1337 = vunpack.c.l.b16 %v1317
        %v1338 = vunpack.c.l.b16 %v1318
        %v1339 = vunpack.c.l.b16 %v1319
        %v1340 = vunpack.c.l.b16 %v1320
        %v1341 = vpack.c.b16 %v1334, %v1333
        %v1342 = vpack.c.b16 %v1336, %v1335
        %v1343 = vpack.c.b16 %v1338, %v1337
        %v1344 = vpack.c.b16 %v1340, %v1339
        %vm1349 = vcmask 523264
        %v1351 = vsel %vm1349, %v1312, 0
        %1353 = vmatpush.bf16.msra.mxu0 0
        %1354 = vmatpush.bf16.msra.mxu0 0
        %1355 = vmatpush.bf16.msra.mxu0 0
        %1356 = vmatpush.bf16.msra.mxu0 0
        %1357 = vmatpush.bf16.msra.mxu0 %v1344
        %1358 = vmatpush.bf16.msra.mxu0 %v1343
        %1359 = vmatpush.bf16.msra.mxu0 %v1342
        %1360 = vmatpush.bf16.msra.mxu0 %v1341
        %1361 = vmatmul.bf16.gmra.mxu0 %v1351
        %v1362 = vpop.f32.mrf.mxu0
        %v1363 = vadd.f32 %v1323, %v1362
        %v1364 = vpop.f32.mrf.mxu0
        %1365 = vdwg.mxu0
        %v1366 = vsel %vm463, %v1363, 0.0
        %1367 = vadd.xlane.f32.xlu0 %v1366
        %v1368 = vpop.xlane.xlu0 %1367
        %v1369 = vmul.f32 %v1368, %v1243
        %v1370 = vmul.f32 %v1363, %v1363
        %v1371 = vsel %vm463, %v1370, 0.0
        %1372 = vadd.xlane.f32.xlu0 %v1371
        %v1373 = vpop.xlane.xlu0 %1372
        %v1374 = vmul.f32 %v1373, %v1243
        %v1375 = vmul.f32 %v1369, %v1369
        %v1376 = vsub.f32 %v1374, %v1375
        %v1377 = vsub.f32 %v1363, %v1369
        %v1378 = vadd.f32 %v1376, 1e-05
        %v1379 = vrsqrt.pop %v1378
        %v1380 = vmul.f32 %v1379, %v1378
        %v1381 = vmul.f32 %v1380, %v1379
        %v1382 = vmul.f32 0.5, %v1381
        %v1383 = vsub.f32 1.5, %v1382
        %v1384 = vmul.f32 %v1379, %v1383
        %vm1385 = vweird.f32 %v1378
        %vm1386 = vweird.f32 %v1379
        %vm1387 = vmor %vm1385, %vm1386
        %v1388 = vsel %vm1387, %v1379, %v1384
        %v1389 = vmul.f32 %v1377, %v1388
        %v1390 = vmul.f32 %v1389, %v1266
        %v1391 = vadd.f32 %v1390, %v1270
        %v1392 = vadd.f32 %v1273, %v1391
        %1393 = vst.msk [vmem:[%s432] sm:$0xff] %vm463, %v1392
        %s1394 = sand.u32 %s297, 1
        %s1395 = scalar_lea.sflag [#allocation4], %s1394
        %s1396 = sand.u32 %s297, 1
        %s1397 = smul.addr %s1396, 8
        %s1398 = scalar_lea.vmem [#allocation5], %s1397
        // Predicated region
        $region73: #{tpu_custom_call.1} parent=67 // pred_check
          %p1399 = pneg %p307
        $region74: #{tpu_custom_call.1} parent=67 // pred_check_branch
          %1401 = sbr.rel (%p1399) target = $region76
        $region75: #{tpu_custom_call.1} parent=67 // pred_region
          %1403 = vsyncadd %s1395, 0
          %s1404 = smul.addr %s27, 8
          %s1405 = scalar_lea.hbm %s12, %s1404
          %s1407 = sshll.u32 %s1398, 4
          %s1408 = int_to_ptr.vmem [resolvable:$true] %s1407
          %s1409 = sshll.u32 %s1405, 4
          %s1410 = int_to_ptr.hbm [resolvable:$true] %s1409
          %1412 = dma.vmem_to_hbm [thread:$0]  %s1408, 128, %s1410, %s1395
        $region76: #{tpu_custom_call.1} parent=67 // pred_fallthru
          _
      $region68: #{tpu_custom_call.1} parent=5 // pred_fallthru
        _
      %p1413 = scmp.le.s32.totalorder 2, %s22
      // Predicated region
      $region77: #{tpu_custom_call.1} parent=5 // pred_check
        %p1414 = pneg %p1413
      $region78: #{tpu_custom_call.1} parent=5 // pred_check_branch
        %1416 = sbr.rel (%p1414) target = $region80
      $region79: #{tpu_custom_call.1} parent=5 // pred_region
        %s1417 = ssub.s32 %s22, 2
        // Predicated region
        $region81: #{tpu_custom_call.1} parent=79 // pred_check
          %p1418 = pneg %p313
        $region82: #{tpu_custom_call.1} parent=79 // pred_check_branch
          %1420 = sbr.rel (%p1418) target = $region84
        $region83: #{tpu_custom_call.1} parent=79 // pred_region
          %s1421 = sand.u32 %s298, 1
          %s1422 = scalar_lea.sflag [#allocation4], %s1421
          %s1423 = sand.u32 %s298, 1
          %s1424 = smul.addr %s1423, 8
          %s1425 = scalar_lea.vmem [#allocation5], %s1424
          %1427 = dma.done %s1422, 128
        $region84: #{tpu_custom_call.1} parent=79 // pred_fallthru
          _
      $region80: #{tpu_custom_call.1} parent=5 // pred_fallthru
        _
    $region6: #{tpu_custom_call.1} parent=1 // loop_footer
      %s26 = sadd.s32 1, %s22
    $region7: #{tpu_custom_call.1} parent=1 // loop_footer_branch
      %21 = sbr.rel target = $region3
    $region8: #{tpu_custom_call.1} parent=1 // loop_exit
      _
    %1428 = vsyncpa [#allocation3], 1
    %s1429 = scalar_lea.sflag [#allocation3], 1
    %1430 = vsyncpa %s1429, 1
    %1431 = vsyncpa [#allocation4], 1
    %s1432 = scalar_lea.sflag [#allocation4], 1
    %1433 = vsyncpa %s1432, 1

</llo_original>
